<compile_context>
chip_gen: v5e
topology: v5e:2x2
jax: 0.10.0
libtpu: 0.0.40
codegen_flags: <defaults>
</compile_context>

<pallas_src>
import functools
import math

import jax
import jax.numpy as jnp
from jax.experimental import pallas as pl
from jax.experimental.pallas import tpu as pltpu

EPS = 1e-5          # layer_norm_eps
NEG_INF = -1e30     # additive mask for cross-image attention entries


def _round_up(x, m):
    return (x + m - 1) // m * m


def _gelu(x, exact):
    if exact:
        # PyTorch nn.GELU() default: exact erf-based GELU.
        return 0.5 * x * (1.0 + jax.lax.erf(x * (1.0 / math.sqrt(2.0))))
    # TODO(synk): tanh-approx fallback (EUP-friendly) is only used if lax.erf
    # does not lower in Mosaic on this jaxlib; it deviates slightly from
    # PyTorch's exact nn.GELU.
    c = math.sqrt(2.0 / math.pi)
    return 0.5 * x * (1.0 + jnp.tanh(c * (x + 0.044715 * x * x * x)))


def _layernorm(x, g, b):
    mu = jnp.mean(x, axis=-1, keepdims=True)
    var = jnp.mean(jnp.square(x - mu), axis=-1, keepdims=True)
    return (x - mu) * jax.lax.rsqrt(var + EPS) * g + b


# ----------------------------------------------------------------------------
# Weight-slab packing (wrapper side, pure layout work, done once).
# ----------------------------------------------------------------------------
class _Packer:
    """Packs 2-D f32 params row-wise into one lane-aligned slab."""

    def __init__(self):
        self._rows = 0
        self._chunks = []
        self._max_w = 0

    def add(self, arr):
        arr = jnp.asarray(arr, jnp.float32)
        if arr.ndim == 1:
            arr = arr[None, :]
        r, c = arr.shape
        off = self._rows
        self._chunks.append((off, arr))
        self._rows = off + _round_up(r, 8)      # every block starts 8-row aligned
        self._max_w = max(self._max_w, c)
        return (off, (r, c))                    # static index used by the kernel

    def finalize(self):
        lanes = _round_up(max(self._max_w, 128), 128)
        total = _round_up(max(self._rows, 8), 8)
        slab = jnp.zeros((total, lanes), jnp.float32)
        for off, arr in self._chunks:
            slab = slab.at[off:off + arr.shape[0], 0:arr.shape[1]].set(arr)
        return slab


def _read(slab_ref, entry):
    off, (r, c) = entry
    return slab_ref[off:off + r, 0:c]           # static slice of the VMEM slab


def _build_slab(pe_params, layer_params, clf_params, heads, head_dims, seq, bs):
    scale = 1.0 / math.sqrt(head_dims)
    eye = jnp.eye(heads, dtype=jnp.float32)
    pk = _Packer()
    idx = {}

    # patch embedding weight, (in, out)
    idx["wpe"] = pk.add(pe_params["w"].T)
    # additive table: cls row = cls + pos[0]; patch rows = pos[1:] + b_pe
    emb_base = jnp.concatenate(
        [pe_params["cls"] + pe_params["pos"][0:1],
         pe_params["pos"][1:] + pe_params["b"]], axis=0)            # (seq, E)
    idx["emb_add"] = pk.add(jnp.tile(emb_base, (bs, 1)))            # (bs*seq, E)

    # block-diagonal additive mask: 0 within an image, -1e30 across images
    R = bs * seq
    img = jnp.repeat(jnp.arange(bs), seq)
    mask = jnp.where(img[:, None] == img[None, :], 0.0, NEG_INF).astype(jnp.float32)
    idx["mask"] = pk.add(mask)                                      # (R, R)

    # cls-token row selector: cls = sel @ x, sel[b, b*seq] = 1
    sel = jnp.zeros((bs, R), jnp.float32).at[
        jnp.arange(bs), jnp.arange(bs) * seq].set(1.0)
    idx["cls_sel"] = pk.add(sel)

    layers = []
    for lp in layer_params:
        L = {}
        L["ln1_g"] = pk.add(lp["ln1_g"]); L["ln1_b"] = pk.add(lp["ln1_b"])
        wq_bd = jnp.kron(eye, lp["wq"].T) * scale     # softmax scale folded in
        wk_bd = jnp.kron(eye, lp["wk"].T)
        wv_bd = jnp.kron(eye, lp["wv"].T)
        L["w_qkv"] = pk.add(jnp.concatenate([wq_bd, wk_bd, wv_bd], axis=1))  # (E,3E)
        b_q = jnp.tile(lp["bq"], (1, heads)) * scale
        b_k = jnp.tile(lp["bk"], (1, heads))
        b_v = jnp.tile(lp["bv"], (1, heads))
        L["b_qkv"] = pk.add(jnp.concatenate([b_q, b_k, b_v], axis=1))        # (1,3E)
        L["wfc"] = pk.add(lp["wfc"].T); L["bfc"] = pk.add(lp["bfc"])
        L["ln2_g"] = pk.add(lp["ln2_g"]); L["ln2_b"] = pk.add(lp["ln2_b"])
        L["wff1"] = pk.add(lp["wff1"].T); L["bff1"] = pk.add(lp["bff1"])
        L["wff2"] = pk.add(lp["wff2"].T); L["bff2"] = pk.add(lp["bff2"])
        layers.append(L)
    idx["layers"] = layers

    idx["cg"] = pk.add(clf_params["g"]); idx["cb"] = pk.add(clf_params["b"])
    idx["cw1"] = pk.add(clf_params["w1"].T); idx["cb1"] = pk.add(clf_params["b1"])
    idx["cw2"] = pk.add(clf_params["w2"].T); idx["cb2"] = pk.add(clf_params["b2"])

    return pk.finalize(), idx


# ----------------------------------------------------------------------------
# Single fused kernel: bs images per grid step, all activations kept as one
# (R = bs*seq, E) 2-D slab so every matmul is a plain 2-D MXU pass.
# ----------------------------------------------------------------------------
def _vit_fused_kernel(patches_ref, slab_ref, out_ref, *, idx, embed, heads,
                      head_dims, exact_gelu):
    rd = functools.partial(_read, slab_ref)
    E, H, Dh = embed, heads, head_dims

    # --- patch embedding + cls token + positional embedding ---
    # patches already carry a zero "cls" row per image; bias / cls / pos live
    # in a single additive table, so no sublane concat is needed.
    p = patches_ref[0]                                              # (R, Din)
    x = jnp.dot(p, rd(idx["wpe"]), preferred_element_type=jnp.float32) + rd(idx["emb_add"])
    mask = rd(idx["mask"])                                          # (R, R)

    for L in idx["layers"]:
        xn = _layernorm(x, rd(L["ln1_g"]), rd(L["ln1_b"]))
        # one wide MXU pass for q|k|v (block-diag per-head weights, q pre-scaled)
        qkv = (jnp.dot(xn, rd(L["w_qkv"]), preferred_element_type=jnp.float32)
               + rd(L["b_qkv"]))                                    # (R, 3E)

        heads_out = []
        for h in range(H):                                          # static unroll
            qh = qkv[:, h * Dh:(h + 1) * Dh]
            kh = qkv[:, E + h * Dh:E + (h + 1) * Dh]
            vh = qkv[:, 2 * E + h * Dh:2 * E + (h + 1) * Dh]
            # whole merged batch at once; cross-image entries masked to -inf
            s = jax.lax.dot_general(qh, kh, (((1,), (1,)), ((), ())),
                                    preferred_element_type=jnp.float32) + mask
            s = s - jnp.max(s, axis=-1, keepdims=True)
            e = jnp.exp(s)
            inv = pl.reciprocal(jnp.sum(e, axis=-1, keepdims=True), approx=True)
            heads_out.append(jnp.dot(e * inv, vh,
                                     preferred_element_type=jnp.float32))

        o = jnp.concatenate(heads_out, axis=-1)                     # (R, E)
        attn = jnp.dot(o, rd(L["wfc"]), preferred_element_type=jnp.float32) + rd(L["bfc"])
        x = x + attn                                                # residual 1

        xn2 = _layernorm(x, rd(L["ln2_g"]), rd(L["ln2_b"]))
        hid = _gelu(jnp.dot(xn2, rd(L["wff1"]), preferred_element_type=jnp.float32)
                    + rd(L["bff1"]), exact_gelu)
        x = x + (jnp.dot(hid, rd(L["wff2"]), preferred_element_type=jnp.float32)
                 + rd(L["bff2"]))                                   # residual 2

    # --- classifier head on the cls tokens (row b*seq of each image) ---
    cls = jnp.dot(rd(idx["cls_sel"]), x, preferred_element_type=jnp.float32)  # (bs, E)
    cn = _layernorm(cls, rd(idx["cg"]), rd(idx["cb"]))
    hid = _gelu(jnp.dot(cn, rd(idx["cw1"]), preferred_element_type=jnp.float32)
                + rd(idx["cb1"]), exact_gelu)
    logits = jnp.dot(hid, rd(idx["cw2"]), preferred_element_type=jnp.float32) + rd(idx["cb2"])
    out_ref[0] = logits


# ----------------------------------------------------------------------------
# Wrapper
# ----------------------------------------------------------------------------
def extract_patches(images, ph, pw):
    # equivalent to unfold/unfold/permute/reshape for the non-overlapping case
    # (patch_height == patch_width) used by the module.
    B, C, H, W = images.shape
    nH, nW = H // ph, W // pw
    p = images.reshape(B, C, nH, ph, nW, pw)
    p = p.transpose(0, 2, 4, 1, 3, 5)                   # (B, nH, nW, C, ph, pw)
    return p.reshape(B, nH * nW, C * ph * pw)


def _default_grid_steps(batch):
    # v7x has 2 TensorCores -> keep 2 parallel grid steps; v5e/v6e are single
    # TC, so a serial grid is pure overhead -> merge the whole batch into one.
    cores = 1
    try:
        kind = jax.devices()[0].device_kind.lower()
        if "v7" in kind or "7x" in kind:
            cores = 2
    except Exception:
        pass
    return max(1, math.gcd(batch, cores))


def vit_forward(images, pe_params, layer_params, clf_params, heads, head_dims,
                ph, pw, exact_gelu=True, grid_steps=None):
    patches = extract_patches(images, ph, pw)           # (B, N, Din)
    B, N, Din = patches.shape
    E = pe_params["w"].shape[0]
    seq = N + 1
    nc = clf_params["w2"].shape[0]

    G = _default_grid_steps(B) if grid_steps is None else grid_steps
    assert B % G == 0
    bs = B // G                                          # images per grid step
    R = bs * seq

    # leading zero row per image stands in for the cls token (its embedding and
    # position come from the additive table inside the kernel).
    padded = jnp.concatenate([jnp.zeros((B, 1, Din), patches.dtype), patches], axis=1)
    padded = padded.reshape(G, R, Din)

    slab, idx = _build_slab(pe_params, layer_params, clf_params, heads,
                            head_dims, seq, bs)

    kernel = functools.partial(_vit_fused_kernel, idx=idx, embed=E, heads=heads,
                               head_dims=head_dims, exact_gelu=exact_gelu)

    # NOTE: weights fit in <2 MiB here so no vmem_limit_bytes is needed and the
    # default (double-)buffering of the constant-index slab is harmless; if the
    # model is scaled up, set pltpu.CompilerParams(vmem_limit_bytes=...) and
    # stream per-layer weights instead of keeping the whole slab resident.
    logits = pl.pallas_call(
        kernel,
        out_shape=jax.ShapeDtypeStruct((G, bs, nc), jnp.float32),
        grid=(G,),
        in_specs=[
            pl.BlockSpec((1, R, Din), lambda i: (i, 0, 0)),
            # constant block index -> slab stays VMEM-resident across steps
            pl.BlockSpec(slab.shape, lambda i: (0, 0)),
        ],
        out_specs=pl.BlockSpec((1, bs, nc), lambda i: (i, 0, 0)),
        compiler_params=pltpu.CompilerParams(dimension_semantics=("parallel",)),
    )(padded, slab)
    return logits.reshape(B, nc)


# ----------------------------------------------------------------------------
# Pure-JAX reference (same math, no Pallas) for verification
# ----------------------------------------------------------------------------
def vit_reference(images, pe_params, layer_params, clf_params, heads, head_dims,
                  ph, pw, exact_gelu=True):
    def layer_norm(x, g, b):
        mu = x.mean(-1, keepdims=True)
        var = ((x - mu) ** 2).mean(-1, keepdims=True)
        return (x - mu) * jax.lax.rsqrt(var + EPS) * g + b

    B = images.shape[0]
    patches = extract_patches(images, ph, pw)
    pe = patches @ pe_params["w"].T + pe_params["b"]
    cls = jnp.broadcast_to(pe_params["cls"][None], (B, 1, pe.shape[-1]))
    x = jnp.concatenate([cls, pe], axis=1) + pe_params["pos"][None]

    for lp in layer_params:
        Bq, L, E = x.shape
        n = layer_norm(x, lp["ln1_g"], lp["ln1_b"])
        nh = n.reshape(Bq, L, heads, head_dims)
        q = jnp.einsum("blhd,od->blho", nh, lp["wq"]) + lp["bq"]
        k = jnp.einsum("blhd,od->blho", nh, lp["wk"]) + lp["bk"]
        v = jnp.einsum("blhd,od->blho", nh, lp["wv"]) + lp["bv"]
        s = jnp.einsum("bqhd,bkhd->bhqk", q, k) / math.sqrt(head_dims)
        p = jax.nn.softmax(s, axis=-1)
        o = jnp.einsum("bhqk,bkhd->bqhd", p, v).reshape(Bq, L, E)
        attn = o @ lp["wfc"].T + lp["bfc"]
        add = x + attn
        n2 = layer_norm(add, lp["ln2_g"], lp["ln2_b"])
        ff = (_gelu(n2 @ lp["wff1"].T + lp["bff1"], exact_gelu) @ lp["wff2"].T
              + lp["bff2"])
        x = ff + add

    cls_out = x[:, 0]
    cn = layer_norm(cls_out, clf_params["g"], clf_params["b"])
    h = _gelu(cn @ clf_params["w1"].T + clf_params["b1"], exact_gelu)
    return h @ clf_params["w2"].T + clf_params["b2"]


if __name__ == "__main__":
    # --- probe whether lax.erf lowers inside a Pallas TPU kernel; the flag is
    #     passed explicitly to BOTH the kernel and the reference (no globals).
    def _erf_lowers_on_tpu():
        try:
            def k(x_ref, o_ref):
                o_ref[...] = jax.lax.erf(x_ref[...])
            y = pl.pallas_call(
                k, out_shape=jax.ShapeDtypeStruct((8, 128), jnp.float32)
            )(jnp.ones((8, 128), jnp.float32))
            jax.block_until_ready(y)
            return True
        except Exception:
            return False

    exact_gelu = _erf_lowers_on_tpu()

    # --- hyperparameters (small, consistent with the module's constraints) ---
    B, C, IMG = 2, 4, 8
    PH = PW = 4                       # patch_height == patch_width
    E = C * PH * PW                   # embedding_dims = 64 (== patch dim)
    HEADS = 4                         # fixed by the qkv_concat implementation
    HEAD_DIMS = E // HEADS            # 16
    MAX_LEN = (IMG // PH) * (IMG // PW)   # 4 patches
    SEQ = MAX_LEN + 1                 # 5 == split(5) size required by SelfAttention
    assert HEADS == 4 and SEQ == 5
    FWD_EXP = 4
    NUM_LAYERS = 2
    NUM_CLASSES = 10

    # --- deterministic parameter init ---
    key = jax.random.PRNGKey(0)
    keys = iter(jax.random.split(key, 64))

    def nrm(shape, scale=0.02):
        return scale * jax.random.normal(next(keys), shape, dtype=jnp.float32)

    pe_params = dict(
        cls=nrm((1, E)),              # cls_embedding
        pos=nrm((SEQ, E)),            # positional_embedding
        w=nrm((E, E)),                # patch_embeddings.weight (out, in)
        b=nrm((1, E)),                # patch_embeddings.bias
    )

    layer_params = []
    for _ in range(NUM_LAYERS):
        layer_params.append(dict(
            ln1_g=jnp.ones((1, E), jnp.float32), ln1_b=jnp.zeros((1, E), jnp.float32),
            wq=nrm((HEAD_DIMS, HEAD_DIMS)), bq=nrm((1, HEAD_DIMS)),
            wk=nrm((HEAD_DIMS, HEAD_DIMS)), bk=nrm((1, HEAD_DIMS)),
            wv=nrm((HEAD_DIMS, HEAD_DIMS)), bv=nrm((1, HEAD_DIMS)),
            wfc=nrm((E, E)), bfc=nrm((1, E)),
            ln2_g=jnp.ones((1, E), jnp.float32), ln2_b=jnp.zeros((1, E), jnp.float32),
            wff1=nrm((E * FWD_EXP, E)), bff1=nrm((1, E * FWD_EXP)),
            wff2=nrm((E, E * FWD_EXP)), bff2=nrm((1, E)),
        ))

    clf_params = dict(
        g=jnp.ones((1, E), jnp.float32), b=jnp.zeros((1, E), jnp.float32),
        w1=nrm((NUM_CLASSES * 4, E)), b1=nrm((1, NUM_CLASSES * 4)),
        w2=nrm((NUM_CLASSES, NUM_CLASSES * 4)), b2=nrm((1, NUM_CLASSES)),
    )

    images = jax.random.normal(next(keys), (B, C, IMG, IMG), dtype=jnp.float32)

    # --- run fused Pallas forward ---
    logits = vit_forward(images, pe_params, layer_params, clf_params,
                         HEADS, HEAD_DIMS, PH, PW, exact_gelu=exact_gelu)
    logits = jax.block_until_ready(logits)
    assert logits.shape == (B, NUM_CLASSES)

    # --- verify against pure-JAX reference (tolerance covers the approx
    #     reciprocal used for the softmax normalization) ---
    ref = vit_reference(images, pe_params, layer_params, clf_params,
                        HEADS, HEAD_DIMS, PH, PW, exact_gelu=exact_gelu)
    if not jnp.allclose(logits, ref, atol=2e-3, rtol=2e-3):
        raise AssertionError(
            "Pallas ViT output mismatch vs reference: max abs diff "
            f"{float(jnp.max(jnp.abs(logits - ref)))}")

    print("KERNEL_OK")
</pallas_src>

<mosaic_0001>
module attributes {stable_mosaic.version = 11 : i64} {
  func.func @k(%arg0: memref<8x128xf32, #tpu.memory_space<vmem>>, %arg1: memref<8x128xf32, #tpu.memory_space<vmem>>) attributes {dimension_semantics = [], scalar_prefetch = 0 : i64, scratch_operands = 0 : i64, tpu.core_type = #tpu.core_type<tc>} {
    %c0 = arith.constant 0 : index
    %c0_0 = arith.constant 0 : index
    %0 = vector.load %arg0[%c0, %c0_0] : memref<8x128xf32, #tpu.memory_space<vmem>>, vector<8x128xf32>
    %1 = math.erf %0 : vector<8x128xf32>
    %c0_1 = arith.constant 0 : index
    %c0_2 = arith.constant 0 : index
    %2 = vector.load %arg1[%c0_1, %c0_2] : memref<8x128xf32, #tpu.memory_space<vmem>>, vector<8x128xf32>
    tpu.vector_store %arg1[%c0_1, %c0_2], %1 {strides = array<i32>} : memref<8x128xf32, #tpu.memory_space<vmem>>, vector<8x128xf32>,
    return
  }
}

module attributes {stable_mosaic.version = 11 : i64} {
  func.func @_vit_fused_kernel(%arg0: i32, %arg1: memref<1x10x64xf32, #tpu.memory_space<vmem>>, %arg2: memref<1264x256xf32, #tpu.memory_space<vmem>>, %arg3: memref<1x2x10xf32, #tpu.memory_space<vmem>>) attributes {dimension_semantics = [#tpu.dimension_semantics<parallel>], iteration_bounds = array<i64: 1>, scalar_prefetch = 0 : i64, scratch_operands = 0 : i64, tpu.core_type = #tpu.core_type<tc>, window_params = [{transform_indices = @transform_0, window_bounds = array<i64: 1, 10, 64>}, {pipeline_mode = #tpu.pipeline_mode<synchronous>, transform_indices = @transform_1, window_bounds = array<i64: 1264, 256>}, {transform_indices = @transform_2, window_bounds = array<i64: 1, 2, 10>}]} {
    %c0 = arith.constant 0 : index
    %c0_0 = arith.constant 0 : index
    %c0_1 = arith.constant 0 : index
    %0 = vector.load %arg1[%c0, %c0_0, %c0_1] : memref<1x10x64xf32, #tpu.memory_space<vmem>>, vector<1x10x64xf32>
    %1 = vector.shape_cast %0 : vector<1x10x64xf32> to vector<10x64xf32>
    %c0_2 = arith.constant 0 : index
    %c0_3 = arith.constant 0 : index
    %2 = vector.load %arg2[%c0_2, %c0_3] : memref<1264x256xf32, #tpu.memory_space<vmem>>, vector<64x64xf32>
    %cst = arith.constant dense<0.000000e+00> : vector<10x64xf32>
    %3 = tpu.matmul %1, %2, %cst {dimension_numbers = #tpu.dot_dimension_numbers<[1], [0], [0], [1], [0, 0, 1, 1], [], []>} : vector<10x64xf32>, vector<64x64xf32>, vector<10x64xf32> -> vector<10x64xf32>
    %c64 = arith.constant 64 : index
    %c0_4 = arith.constant 0 : index
    %4 = vector.load %arg2[%c64, %c0_4] : memref<1264x256xf32, #tpu.memory_space<vmem>>, vector<10x64xf32>
    %5 = arith.addf %3, %4 : vector<10x64xf32>
    %c80 = arith.constant 80 : index
    %c0_5 = arith.constant 0 : index
    %6 = vector.load %arg2[%c80, %c0_5] : memref<1264x256xf32, #tpu.memory_space<vmem>>, vector<10x10xf32>
    %c104 = arith.constant 104 : index
    %c0_6 = arith.constant 0 : index
    %7 = vector.load %arg2[%c104, %c0_6] : memref<1264x256xf32, #tpu.memory_space<vmem>>, vector<1x64xf32>
    %c112 = arith.constant 112 : index
    %c0_7 = arith.constant 0 : index
    %8 = vector.load %arg2[%c112, %c0_7] : memref<1264x256xf32, #tpu.memory_space<vmem>>, vector<1x64xf32>
    %cst_8 = arith.constant dense<0.000000e+00> : vector<10xf32>
    %9 = vector.multi_reduction <add>, %5, %cst_8 [1] : vector<10x64xf32> to vector<10xf32>
    %10 = vector.shape_cast %9 : vector<10xf32> to vector<10x1xf32>
    %cst_9 = arith.constant 6.400000e+01 : f32
    %11 = vector.broadcast %cst_9 : f32 to vector<10x1xf32>
    %12 = arith.divf %10, %11 : vector<10x1xf32>
    %13 = vector.broadcast %12 : vector<10x1xf32> to vector<10x64xf32>
    %14 = arith.subf %5, %13 : vector<10x64xf32>
    %15 = arith.mulf %14, %14 : vector<10x64xf32>
    %cst_10 = arith.constant dense<0.000000e+00> : vector<10xf32>
    %16 = vector.multi_reduction <add>, %15, %cst_10 [1] : vector<10x64xf32> to vector<10xf32>
    %17 = vector.shape_cast %16 : vector<10xf32> to vector<10x1xf32>
    %cst_11 = arith.constant 6.400000e+01 : f32
    %18 = vector.broadcast %cst_11 : f32 to vector<10x1xf32>
    %19 = arith.divf %17, %18 : vector<10x1xf32>
    %20 = vector.broadcast %12 : vector<10x1xf32> to vector<10x64xf32>
    %21 = arith.subf %5, %20 : vector<10x64xf32>
    %cst_12 = arith.constant 9.99999974E-6 : f32
    %22 = vector.broadcast %cst_12 : f32 to vector<10x1xf32>
    %23 = arith.addf %19, %22 : vector<10x1xf32>
    %24 = math.rsqrt %23 : vector<10x1xf32>
    %25 = vector.broadcast %24 : vector<10x1xf32> to vector<10x64xf32>
    %26 = arith.mulf %21, %25 : vector<10x64xf32>
    %27 = vector.broadcast %7 : vector<1x64xf32> to vector<10x64xf32>
    %28 = arith.mulf %26, %27 : vector<10x64xf32>
    %29 = vector.broadcast %8 : vector<1x64xf32> to vector<10x64xf32>
    %30 = arith.addf %28, %29 : vector<10x64xf32>
    %c120 = arith.constant 120 : index
    %c0_13 = arith.constant 0 : index
    %31 = vector.load %arg2[%c120, %c0_13] : memref<1264x256xf32, #tpu.memory_space<vmem>>, vector<64x192xf32>
    %cst_14 = arith.constant dense<0.000000e+00> : vector<10x192xf32>
    %32 = tpu.matmul %30, %31, %cst_14 {dimension_numbers = #tpu.dot_dimension_numbers<[1], [0], [0], [1], [0, 0, 1, 1], [], []>} : vector<10x64xf32>, vector<64x192xf32>, vector<10x192xf32> -> vector<10x192xf32>
    %c184 = arith.constant 184 : index
    %c0_15 = arith.constant 0 : index
    %33 = vector.load %arg2[%c184, %c0_15] : memref<1264x256xf32, #tpu.memory_space<vmem>>, vector<1x192xf32>
    %34 = vector.broadcast %33 : vector<1x192xf32> to vector<10x192xf32>
    %35 = arith.addf %32, %34 : vector<10x192xf32>
    %36 = vector.extract_strided_slice %35 {offsets = [0, 0], sizes = [10, 16], strides = [1, 1]} : vector<10x192xf32> to vector<10x16xf32>
    %37 = vector.extract_strided_slice %35 {offsets = [0, 64], sizes = [10, 16], strides = [1, 1]} : vector<10x192xf32> to vector<10x16xf32>
    %38 = vector.extract_strided_slice %35 {offsets = [0, 128], sizes = [10, 16], strides = [1, 1]} : vector<10x192xf32> to vector<10x16xf32>
    %cst_16 = arith.constant dense<0.000000e+00> : vector<10x10xf32>
    %39 = tpu.matmul %36, %37, %cst_16 {dimension_numbers = #tpu.dot_dimension_numbers<[1], [1], [0], [0], [0, 0, 1, 0], [], []>} : vector<10x16xf32>, vector<10x16xf32>, vector<10x10xf32> -> vector<10x10xf32>
    %40 = arith.addf %39, %6 : vector<10x10xf32>
    %cst_17 = arith.constant dense<0xFF800000> : vector<10xf32>
    %41 = vector.multi_reduction <maximumf>, %40, %cst_17 [1] : vector<10x10xf32> to vector<10xf32>
    %42 = vector.shape_cast %41 : vector<10xf32> to vector<10x1xf32>
    %43 = vector.broadcast %42 : vector<10x1xf32> to vector<10x10xf32>
    %44 = arith.subf %40, %43 : vector<10x10xf32>
    %45 = math.exp %44 : vector<10x10xf32>
    %cst_18 = arith.constant dense<0.000000e+00> : vector<10xf32>
    %46 = vector.multi_reduction <add>, %45, %cst_18 [1] : vector<10x10xf32> to vector<10xf32>
    %47 = vector.shape_cast %46 : vector<10xf32> to vector<10x1xf32>
    %48 = tpu.reciprocal %47 {approx = true} : vector<10x1xf32> -> vector<10x1xf32>
    %49 = vector.broadcast %48 : vector<10x1xf32> to vector<10x10xf32>
    %50 = arith.mulf %45, %49 : vector<10x10xf32>
    %cst_19 = arith.constant dense<0.000000e+00> : vector<10x16xf32>
    %51 = tpu.matmul %50, %38, %cst_19 {dimension_numbers = #tpu.dot_dimension_numbers<[1], [0], [0], [1], [0, 0, 1, 1], [], []>} : vector<10x10xf32>, vector<10x16xf32>, vector<10x16xf32> -> vector<10x16xf32>
    %52 = vector.extract_strided_slice %35 {offsets = [0, 16], sizes = [10, 16], strides = [1, 1]} : vector<10x192xf32> to vector<10x16xf32>
    %53 = vector.extract_strided_slice %35 {offsets = [0, 80], sizes = [10, 16], strides = [1, 1]} : vector<10x192xf32> to vector<10x16xf32>
    %54 = vector.extract_strided_slice %35 {offsets = [0, 144], sizes = [10, 16], strides = [1, 1]} : vector<10x192xf32> to vector<10x16xf32>
    %cst_20 = arith.constant dense<0.000000e+00> : vector<10x10xf32>
    %55 = tpu.matmul %52, %53, %cst_20 {dimension_numbers = #tpu.dot_dimension_numbers<[1], [1], [0], [0], [0, 0, 1, 0], [], []>} : vector<10x16xf32>, vector<10x16xf32>, vector<10x10xf32> -> vector<10x10xf32>
    %56 = arith.addf %55, %6 : vector<10x10xf32>
    %cst_21 = arith.constant dense<0xFF800000> : vector<10xf32>
    %57 = vector.multi_reduction <maximumf>, %56, %cst_21 [1] : vector<10x10xf32> to vector<10xf32>
    %58 = vector.shape_cast %57 : vector<10xf32> to vector<10x1xf32>
    %59 = vector.broadcast %58 : vector<10x1xf32> to vector<10x10xf32>
    %60 = arith.subf %56, %59 : vector<10x10xf32>
    %61 = math.exp %60 : vector<10x10xf32>
    %cst_22 = arith.constant dense<0.000000e+00> : vector<10xf32>
    %62 = vector.multi_reduction <add>, %61, %cst_22 [1] : vector<10x10xf32> to vector<10xf32>
    %63 = vector.shape_cast %62 : vector<10xf32> to vector<10x1xf32>
    %64 = tpu.reciprocal %63 {approx = true} : vector<10x1xf32> -> vector<10x1xf32>
    %65 = vector.broadcast %64 : vector<10x1xf32> to vector<10x10xf32>
    %66 = arith.mulf %61, %65 : vector<10x10xf32>
    %cst_23 = arith.constant dense<0.000000e+00> : vector<10x16xf32>
    %67 = tpu.matmul %66, %54, %cst_23 {dimension_numbers = #tpu.dot_dimension_numbers<[1], [0], [0], [1], [0, 0, 1, 1], [], []>} : vector<10x10xf32>, vector<10x16xf32>, vector<10x16xf32> -> vector<10x16xf32>
    %68 = vector.extract_strided_slice %35 {offsets = [0, 32], sizes = [10, 16], strides = [1, 1]} : vector<10x192xf32> to vector<10x16xf32>
    %69 = vector.extract_strided_slice %35 {offsets = [0, 96], sizes = [10, 16], strides = [1, 1]} : vector<10x192xf32> to vector<10x16xf32>
    %70 = vector.extract_strided_slice %35 {offsets = [0, 160], sizes = [10, 16], strides = [1, 1]} : vector<10x192xf32> to vector<10x16xf32>
    %cst_24 = arith.constant dense<0.000000e+00> : vector<10x10xf32>
    %71 = tpu.matmul %68, %69, %cst_24 {dimension_numbers = #tpu.dot_dimension_numbers<[1], [1], [0], [0], [0, 0, 1, 0], [], []>} : vector<10x16xf32>, vector<10x16xf32>, vector<10x10xf32> -> vector<10x10xf32>
    %72 = arith.addf %71, %6 : vector<10x10xf32>
    %cst_25 = arith.constant dense<0xFF800000> : vector<10xf32>
    %73 = vector.multi_reduction <maximumf>, %72, %cst_25 [1] : vector<10x10xf32> to vector<10xf32>
    %74 = vector.shape_cast %73 : vector<10xf32> to vector<10x1xf32>
    %75 = vector.broadcast %74 : vector<10x1xf32> to vector<10x10xf32>
    %76 = arith.subf %72, %75 : vector<10x10xf32>
    %77 = math.exp %76 : vector<10x10xf32>
    %cst_26 = arith.constant dense<0.000000e+00> : vector<10xf32>
    %78 = vector.multi_reduction <add>, %77, %cst_26 [1] : vector<10x10xf32> to vector<10xf32>
    %79 = vector.shape_cast %78 : vector<10xf32> to vector<10x1xf32>
    %80 = tpu.reciprocal %79 {approx = true} : vector<10x1xf32> -> vector<10x1xf32>
    %81 = vector.broadcast %80 : vector<10x1xf32> to vector<10x10xf32>
    %82 = arith.mulf %77, %81 : vector<10x10xf32>
    %cst_27 = arith.constant dense<0.000000e+00> : vector<10x16xf32>
    %83 = tpu.matmul %82, %70, %cst_27 {dimension_numbers = #tpu.dot_dimension_numbers<[1], [0], [0], [1], [0, 0, 1, 1], [], []>} : vector<10x10xf32>, vector<10x16xf32>, vector<10x16xf32> -> vector<10x16xf32>
    %84 = vector.extract_strided_slice %35 {offsets = [0, 48], sizes = [10, 16], strides = [1, 1]} : vector<10x192xf32> to vector<10x16xf32>
    %85 = vector.extract_strided_slice %35 {offsets = [0, 112], sizes = [10, 16], strides = [1, 1]} : vector<10x192xf32> to vector<10x16xf32>
    %86 = vector.extract_strided_slice %35 {offsets = [0, 176], sizes = [10, 16], strides = [1, 1]} : vector<10x192xf32> to vector<10x16xf32>
    %cst_28 = arith.constant dense<0.000000e+00> : vector<10x10xf32>
    %87 = tpu.matmul %84, %85, %cst_28 {dimension_numbers = #tpu.dot_dimension_numbers<[1], [1], [0], [0], [0, 0, 1, 0], [], []>} : vector<10x16xf32>, vector<10x16xf32>, vector<10x10xf32> -> vector<10x10xf32>
    %88 = arith.addf %87, %6 : vector<10x10xf32>
    %cst_29 = arith.constant dense<0xFF800000> : vector<10xf32>
    %89 = vector.multi_reduction <maximumf>, %88, %cst_29 [1] : vector<10x10xf32> to vector<10xf32>
    %90 = vector.shape_cast %89 : vector<10xf32> to vector<10x1xf32>
    %91 = vector.broadcast %90 : vector<10x1xf32> to vector<10x10xf32>
    %92 = arith.subf %88, %91 : vector<10x10xf32>
    %93 = math.exp %92 : vector<10x10xf32>
    %cst_30 = arith.constant dense<0.000000e+00> : vector<10xf32>
    %94 = vector.multi_reduction <add>, %93, %cst_30 [1] : vector<10x10xf32> to vector<10xf32>
    %95 = vector.shape_cast %94 : vector<10xf32> to vector<10x1xf32>
    %96 = tpu.reciprocal %95 {approx = true} : vector<10x1xf32> -> vector<10x1xf32>
    %97 = vector.broadcast %96 : vector<10x1xf32> to vector<10x10xf32>
    %98 = arith.mulf %93, %97 : vector<10x10xf32>
    %cst_31 = arith.constant dense<0.000000e+00> : vector<10x16xf32>
    %99 = tpu.matmul %98, %86, %cst_31 {dimension_numbers = #tpu.dot_dimension_numbers<[1], [0], [0], [1], [0, 0, 1, 1], [], []>} : vector<10x10xf32>, vector<10x16xf32>, vector<10x16xf32> -> vector<10x16xf32>
    %100 = tpu.concatenate %51, %67, %83, %99 in 1 : vector<10x16xf32>, vector<10x16xf32>, vector<10x16xf32>, vector<10x16xf32> -> vector<10x64xf32>
    %c192 = arith.constant 192 : index
    %c0_32 = arith.constant 0 : index
    %101 = vector.load %arg2[%c192, %c0_32] : memref<1264x256xf32, #tpu.memory_space<vmem>>, vector<64x64xf32>
    %cst_33 = arith.constant dense<0.000000e+00> : vector<10x64xf32>
    %102 = tpu.matmul %100, %101, %cst_33 {dimension_numbers = #tpu.dot_dimension_numbers<[1], [0], [0], [1], [0, 0, 1, 1], [], []>} : vector<10x64xf32>, vector<64x64xf32>, vector<10x64xf32> -> vector<10x64xf32>
    %c256 = arith.constant 256 : index
    %c0_34 = arith.constant 0 : index
    %103 = vector.load %arg2[%c256, %c0_34] : memref<1264x256xf32, #tpu.memory_space<vmem>>, vector<1x64xf32>
    %104 = vector.broadcast %103 : vector<1x64xf32> to vector<10x64xf32>
    %105 = arith.addf %102, %104 : vector<10x64xf32>
    %106 = arith.addf %5, %105 : vector<10x64xf32>
    %c264 = arith.constant 264 : index
    %c0_35 = arith.constant 0 : index
    %107 = vector.load %arg2[%c264, %c0_35] : memref<1264x256xf32, #tpu.memory_space<vmem>>, vector<1x64xf32>
    %c272 = arith.constant 272 : index
    %c0_36 = arith.constant 0 : index
    %108 = vector.load %arg2[%c272, %c0_36] : memref<1264x256xf32, #tpu.memory_space<vmem>>, vector<1x64xf32>
    %cst_37 = arith.constant dense<0.000000e+00> : vector<10xf32>
    %109 = vector.multi_reduction <add>, %106, %cst_37 [1] : vector<10x64xf32> to vector<10xf32>
    %110 = vector.shape_cast %109 : vector<10xf32> to vector<10x1xf32>
    %cst_38 = arith.constant 6.400000e+01 : f32
    %111 = vector.broadcast %cst_38 : f32 to vector<10x1xf32>
    %112 = arith.divf %110, %111 : vector<10x1xf32>
    %113 = vector.broadcast %112 : vector<10x1xf32> to vector<10x64xf32>
    %114 = arith.subf %106, %113 : vector<10x64xf32>
    %115 = arith.mulf %114, %114 : vector<10x64xf32>
    %cst_39 = arith.constant dense<0.000000e+00> : vector<10xf32>
    %116 = vector.multi_reduction <add>, %115, %cst_39 [1] : vector<10x64xf32> to vector<10xf32>
    %117 = vector.shape_cast %116 : vector<10xf32> to vector<10x1xf32>
    %cst_40 = arith.constant 6.400000e+01 : f32
    %118 = vector.broadcast %cst_40 : f32 to vector<10x1xf32>
    %119 = arith.divf %117, %118 : vector<10x1xf32>
    %120 = vector.broadcast %112 : vector<10x1xf32> to vector<10x64xf32>
    %121 = arith.subf %106, %120 : vector<10x64xf32>
    %cst_41 = arith.constant 9.99999974E-6 : f32
    %122 = vector.broadcast %cst_41 : f32 to vector<10x1xf32>
    %123 = arith.addf %119, %122 : vector<10x1xf32>
    %124 = math.rsqrt %123 : vector<10x1xf32>
    %125 = vector.broadcast %124 : vector<10x1xf32> to vector<10x64xf32>
    %126 = arith.mulf %121, %125 : vector<10x64xf32>
    %127 = vector.broadcast %107 : vector<1x64xf32> to vector<10x64xf32>
    %128 = arith.mulf %126, %127 : vector<10x64xf32>
    %129 = vector.broadcast %108 : vector<1x64xf32> to vector<10x64xf32>
    %130 = arith.addf %128, %129 : vector<10x64xf32>
    %c280 = arith.constant 280 : index
    %c0_42 = arith.constant 0 : index
    %131 = vector.load %arg2[%c280, %c0_42] : memref<1264x256xf32, #tpu.memory_space<vmem>>, vector<64x256xf32>
    %cst_43 = arith.constant dense<0.000000e+00> : vector<10x256xf32>
    %132 = tpu.matmul %130, %131, %cst_43 {dimension_numbers = #tpu.dot_dimension_numbers<[1], [0], [0], [1], [0, 0, 1, 1], [], []>} : vector<10x64xf32>, vector<64x256xf32>, vector<10x256xf32> -> vector<10x256xf32>
    %c344 = arith.constant 344 : index
    %c0_44 = arith.constant 0 : index
    %133 = vector.load %arg2[%c344, %c0_44] : memref<1264x256xf32, #tpu.memory_space<vmem>>, vector<1x256xf32>
    %134 = vector.broadcast %133 : vector<1x256xf32> to vector<10x256xf32>
    %135 = arith.addf %132, %134 : vector<10x256xf32>
    %cst_45 = arith.constant 5.000000e-01 : f32
    %136 = vector.broadcast %cst_45 : f32 to vector<10x256xf32>
    %137 = arith.mulf %136, %135 : vector<10x256xf32>
    %cst_46 = arith.constant 4.471500e-02 : f32
    %138 = vector.broadcast %cst_46 : f32 to vector<10x256xf32>
    %139 = arith.mulf %138, %135 : vector<10x256xf32>
    %140 = arith.mulf %139, %135 : vector<10x256xf32>
    %141 = arith.mulf %140, %135 : vector<10x256xf32>
    %142 = arith.addf %135, %141 : vector<10x256xf32>
    %cst_47 = arith.constant 0.797884583 : f32
    %143 = vector.broadcast %cst_47 : f32 to vector<10x256xf32>
    %144 = arith.mulf %143, %142 : vector<10x256xf32>
    %145 = math.tanh %144 : vector<10x256xf32>
    %cst_48 = arith.constant 1.000000e+00 : f32
    %146 = vector.broadcast %cst_48 : f32 to vector<10x256xf32>
    %147 = arith.addf %146, %145 : vector<10x256xf32>
    %148 = arith.mulf %137, %147 : vector<10x256xf32>
    %c352 = arith.constant 352 : index
    %c0_49 = arith.constant 0 : index
    %149 = vector.load %arg2[%c352, %c0_49] : memref<1264x256xf32, #tpu.memory_space<vmem>>, vector<256x64xf32>
    %cst_50 = arith.constant dense<0.000000e+00> : vector<10x64xf32>
    %150 = tpu.matmul %148, %149, %cst_50 {dimension_numbers = #tpu.dot_dimension_numbers<[1], [0], [0], [1], [0, 0, 1, 1], [], []>} : vector<10x256xf32>, vector<256x64xf32>, vector<10x64xf32> -> vector<10x64xf32>
    %c608 = arith.constant 608 : index
    %c0_51 = arith.constant 0 : index
    %151 = vector.load %arg2[%c608, %c0_51] : memref<1264x256xf32, #tpu.memory_space<vmem>>, vector<1x64xf32>
    %152 = vector.broadcast %151 : vector<1x64xf32> to vector<10x64xf32>
    %153 = arith.addf %150, %152 : vector<10x64xf32>
    %154 = arith.addf %106, %153 : vector<10x64xf32>
    %c616 = arith.constant 616 : index
    %c0_52 = arith.constant 0 : index
    %155 = vector.load %arg2[%c616, %c0_52] : memref<1264x256xf32, #tpu.memory_space<vmem>>, vector<1x64xf32>
    %c624 = arith.constant 624 : index
    %c0_53 = arith.constant 0 : index
    %156 = vector.load %arg2[%c624, %c0_53] : memref<1264x256xf32, #tpu.memory_space<vmem>>, vector<1x64xf32>
    %cst_54 = arith.constant dense<0.000000e+00> : vector<10xf32>
    %157 = vector.multi_reduction <add>, %154, %cst_54 [1] : vector<10x64xf32> to vector<10xf32>
    %158 = vector.shape_cast %157 : vector<10xf32> to vector<10x1xf32>
    %cst_55 = arith.constant 6.400000e+01 : f32
    %159 = vector.broadcast %cst_55 : f32 to vector<10x1xf32>
    %160 = arith.divf %158, %159 : vector<10x1xf32>
    %161 = vector.broadcast %160 : vector<10x1xf32> to vector<10x64xf32>
    %162 = arith.subf %154, %161 : vector<10x64xf32>
    %163 = arith.mulf %162, %162 : vector<10x64xf32>
    %cst_56 = arith.constant dense<0.000000e+00> : vector<10xf32>
    %164 = vector.multi_reduction <add>, %163, %cst_56 [1] : vector<10x64xf32> to vector<10xf32>
    %165 = vector.shape_cast %164 : vector<10xf32> to vector<10x1xf32>
    %cst_57 = arith.constant 6.400000e+01 : f32
    %166 = vector.broadcast %cst_57 : f32 to vector<10x1xf32>
    %167 = arith.divf %165, %166 : vector<10x1xf32>
    %168 = vector.broadcast %160 : vector<10x1xf32> to vector<10x64xf32>
    %169 = arith.subf %154, %168 : vector<10x64xf32>
    %cst_58 = arith.constant 9.99999974E-6 : f32
    %170 = vector.broadcast %cst_58 : f32 to vector<10x1xf32>
    %171 = arith.addf %167, %170 : vector<10x1xf32>
    %172 = math.rsqrt %171 : vector<10x1xf32>
    %173 = vector.broadcast %172 : vector<10x1xf32> to vector<10x64xf32>
    %174 = arith.mulf %169, %173 : vector<10x64xf32>
    %175 = vector.broadcast %155 : vector<1x64xf32> to vector<10x64xf32>
    %176 = arith.mulf %174, %175 : vector<10x64xf32>
    %177 = vector.broadcast %156 : vector<1x64xf32> to vector<10x64xf32>
    %178 = arith.addf %176, %177 : vector<10x64xf32>
    %c632 = arith.constant 632 : index
    %c0_59 = arith.constant 0 : index
    %179 = vector.load %arg2[%c632, %c0_59] : memref<1264x256xf32, #tpu.memory_space<vmem>>, vector<64x192xf32>
    %cst_60 = arith.constant dense<0.000000e+00> : vector<10x192xf32>
    %180 = tpu.matmul %178, %179, %cst_60 {dimension_numbers = #tpu.dot_dimension_numbers<[1], [0], [0], [1], [0, 0, 1, 1], [], []>} : vector<10x64xf32>, vector<64x192xf32>, vector<10x192xf32> -> vector<10x192xf32>
    %c696 = arith.constant 696 : index
    %c0_61 = arith.constant 0 : index
    %181 = vector.load %arg2[%c696, %c0_61] : memref<1264x256xf32, #tpu.memory_space<vmem>>, vector<1x192xf32>
    %182 = vector.broadcast %181 : vector<1x192xf32> to vector<10x192xf32>
    %183 = arith.addf %180, %182 : vector<10x192xf32>
    %184 = vector.extract_strided_slice %183 {offsets = [0, 0], sizes = [10, 16], strides = [1, 1]} : vector<10x192xf32> to vector<10x16xf32>
    %185 = vector.extract_strided_slice %183 {offsets = [0, 64], sizes = [10, 16], strides = [1, 1]} : vector<10x192xf32> to vector<10x16xf32>
    %186 = vector.extract_strided_slice %183 {offsets = [0, 128], sizes = [10, 16], strides = [1, 1]} : vector<10x192xf32> to vector<10x16xf32>
    %cst_62 = arith.constant dense<0.000000e+00> : vector<10x10xf32>
    %187 = tpu.matmul %184, %185, %cst_62 {dimension_numbers = #tpu.dot_dimension_numbers<[1], [1], [0], [0], [0, 0, 1, 0], [], []>} : vector<10x16xf32>, vector<10x16xf32>, vector<10x10xf32> -> vector<10x10xf32>
    %188 = arith.addf %187, %6 : vector<10x10xf32>
    %cst_63 = arith.constant dense<0xFF800000> : vector<10xf32>
    %189 = vector.multi_reduction <maximumf>, %188, %cst_63 [1] : vector<10x10xf32> to vector<10xf32>
    %190 = vector.shape_cast %189 : vector<10xf32> to vector<10x1xf32>
    %191 = vector.broadcast %190 : vector<10x1xf32> to vector<10x10xf32>
    %192 = arith.subf %188, %191 : vector<10x10xf32>
    %193 = math.exp %192 : vector<10x10xf32>
    %cst_64 = arith.constant dense<0.000000e+00> : vector<10xf32>
    %194 = vector.multi_reduction <add>, %193, %cst_64 [1] : vector<10x10xf32> to vector<10xf32>
    %195 = vector.shape_cast %194 : vector<10xf32> to vector<10x1xf32>
    %196 = tpu.reciprocal %195 {approx = true} : vector<10x1xf32> -> vector<10x1xf32>
    %197 = vector.broadcast %196 : vector<10x1xf32> to vector<10x10xf32>
    %198 = arith.mulf %193, %197 : vector<10x10xf32>
    %cst_65 = arith.constant dense<0.000000e+00> : vector<10x16xf32>
    %199 = tpu.matmul %198, %186, %cst_65 {dimension_numbers = #tpu.dot_dimension_numbers<[1], [0], [0], [1], [0, 0, 1, 1], [], []>} : vector<10x10xf32>, vector<10x16xf32>, vector<10x16xf32> -> vector<10x16xf32>
    %200 = vector.extract_strided_slice %183 {offsets = [0, 16], sizes = [10, 16], strides = [1, 1]} : vector<10x192xf32> to vector<10x16xf32>
    %201 = vector.extract_strided_slice %183 {offsets = [0, 80], sizes = [10, 16], strides = [1, 1]} : vector<10x192xf32> to vector<10x16xf32>
    %202 = vector.extract_strided_slice %183 {offsets = [0, 144], sizes = [10, 16], strides = [1, 1]} : vector<10x192xf32> to vector<10x16xf32>
    %cst_66 = arith.constant dense<0.000000e+00> : vector<10x10xf32>
    %203 = tpu.matmul %200, %201, %cst_66 {dimension_numbers = #tpu.dot_dimension_numbers<[1], [1], [0], [0], [0, 0, 1, 0], [], []>} : vector<10x16xf32>, vector<10x16xf32>, vector<10x10xf32> -> vector<10x10xf32>
    %204 = arith.addf %203, %6 : vector<10x10xf32>
    %cst_67 = arith.constant dense<0xFF800000> : vector<10xf32>
    %205 = vector.multi_reduction <maximumf>, %204, %cst_67 [1] : vector<10x10xf32> to vector<10xf32>
    %206 = vector.shape_cast %205 : vector<10xf32> to vector<10x1xf32>
    %207 = vector.broadcast %206 : vector<10x1xf32> to vector<10x10xf32>
    %208 = arith.subf %204, %207 : vector<10x10xf32>
    %209 = math.exp %208 : vector<10x10xf32>
    %cst_68 = arith.constant dense<0.000000e+00> : vector<10xf32>
    %210 = vector.multi_reduction <add>, %209, %cst_68 [1] : vector<10x10xf32> to vector<10xf32>
    %211 = vector.shape_cast %210 : vector<10xf32> to vector<10x1xf32>
    %212 = tpu.reciprocal %211 {approx = true} : vector<10x1xf32> -> vector<10x1xf32>
    %213 = vector.broadcast %212 : vector<10x1xf32> to vector<10x10xf32>
    %214 = arith.mulf %209, %213 : vector<10x10xf32>
    %cst_69 = arith.constant dense<0.000000e+00> : vector<10x16xf32>
    %215 = tpu.matmul %214, %202, %cst_69 {dimension_numbers = #tpu.dot_dimension_numbers<[1], [0], [0], [1], [0, 0, 1, 1], [], []>} : vector<10x10xf32>, vector<10x16xf32>, vector<10x16xf32> -> vector<10x16xf32>
    %216 = vector.extract_strided_slice %183 {offsets = [0, 32], sizes = [10, 16], strides = [1, 1]} : vector<10x192xf32> to vector<10x16xf32>
    %217 = vector.extract_strided_slice %183 {offsets = [0, 96], sizes = [10, 16], strides = [1, 1]} : vector<10x192xf32> to vector<10x16xf32>
    %218 = vector.extract_strided_slice %183 {offsets = [0, 160], sizes = [10, 16], strides = [1, 1]} : vector<10x192xf32> to vector<10x16xf32>
    %cst_70 = arith.constant dense<0.000000e+00> : vector<10x10xf32>
    %219 = tpu.matmul %216, %217, %cst_70 {dimension_numbers = #tpu.dot_dimension_numbers<[1], [1], [0], [0], [0, 0, 1, 0], [], []>} : vector<10x16xf32>, vector<10x16xf32>, vector<10x10xf32> -> vector<10x10xf32>
    %220 = arith.addf %219, %6 : vector<10x10xf32>
    %cst_71 = arith.constant dense<0xFF800000> : vector<10xf32>
    %221 = vector.multi_reduction <maximumf>, %220, %cst_71 [1] : vector<10x10xf32> to vector<10xf32>
    %222 = vector.shape_cast %221 : vector<10xf32> to vector<10x1xf32>
    %223 = vector.broadcast %222 : vector<10x1xf32> to vector<10x10xf32>
    %224 = arith.subf %220, %223 : vector<10x10xf32>
    %225 = math.exp %224 : vector<10x10xf32>
    %cst_72 = arith.constant dense<0.000000e+00> : vector<10xf32>
    %226 = vector.multi_reduction <add>, %225, %cst_72 [1] : vector<10x10xf32> to vector<10xf32>
    %227 = vector.shape_cast %226 : vector<10xf32> to vector<10x1xf32>
    %228 = tpu.reciprocal %227 {approx = true} : vector<10x1xf32> -> vector<10x1xf32>
    %229 = vector.broadcast %228 : vector<10x1xf32> to vector<10x10xf32>
    %230 = arith.mulf %225, %229 : vector<10x10xf32>
    %cst_73 = arith.constant dense<0.000000e+00> : vector<10x16xf32>
    %231 = tpu.matmul %230, %218, %cst_73 {dimension_numbers = #tpu.dot_dimension_numbers<[1], [0], [0], [1], [0, 0, 1, 1], [], []>} : vector<10x10xf32>, vector<10x16xf32>, vector<10x16xf32> -> vector<10x16xf32>
    %232 = vector.extract_strided_slice %183 {offsets = [0, 48], sizes = [10, 16], strides = [1, 1]} : vector<10x192xf32> to vector<10x16xf32>
    %233 = vector.extract_strided_slice %183 {offsets = [0, 112], sizes = [10, 16], strides = [1, 1]} : vector<10x192xf32> to vector<10x16xf32>
    %234 = vector.extract_strided_slice %183 {offsets = [0, 176], sizes = [10, 16], strides = [1, 1]} : vector<10x192xf32> to vector<10x16xf32>
    %cst_74 = arith.constant dense<0.000000e+00> : vector<10x10xf32>
    %235 = tpu.matmul %232, %233, %cst_74 {dimension_numbers = #tpu.dot_dimension_numbers<[1], [1], [0], [0], [0, 0, 1, 0], [], []>} : vector<10x16xf32>, vector<10x16xf32>, vector<10x10xf32> -> vector<10x10xf32>
    %236 = arith.addf %235, %6 : vector<10x10xf32>
    %cst_75 = arith.constant dense<0xFF800000> : vector<10xf32>
    %237 = vector.multi_reduction <maximumf>, %236, %cst_75 [1] : vector<10x10xf32> to vector<10xf32>
    %238 = vector.shape_cast %237 : vector<10xf32> to vector<10x1xf32>
    %239 = vector.broadcast %238 : vector<10x1xf32> to vector<10x10xf32>
    %240 = arith.subf %236, %239 : vector<10x10xf32>
    %241 = math.exp %240 : vector<10x10xf32>
    %cst_76 = arith.constant dense<0.000000e+00> : vector<10xf32>
    %242 = vector.multi_reduction <add>, %241, %cst_76 [1] : vector<10x10xf32> to vector<10xf32>
    %243 = vector.shape_cast %242 : vector<10xf32> to vector<10x1xf32>
    %244 = tpu.reciprocal %243 {approx = true} : vector<10x1xf32> -> vector<10x1xf32>
    %245 = vector.broadcast %244 : vector<10x1xf32> to vector<10x10xf32>
    %246 = arith.mulf %241, %245 : vector<10x10xf32>
    %cst_77 = arith.constant dense<0.000000e+00> : vector<10x16xf32>
    %247 = tpu.matmul %246, %234, %cst_77 {dimension_numbers = #tpu.dot_dimension_numbers<[1], [0], [0], [1], [0, 0, 1, 1], [], []>} : vector<10x10xf32>, vector<10x16xf32>, vector<10x16xf32> -> vector<10x16xf32>
    %248 = tpu.concatenate %199, %215, %231, %247 in 1 : vector<10x16xf32>, vector<10x16xf32>, vector<10x16xf32>, vector<10x16xf32> -> vector<10x64xf32>
    %c704 = arith.constant 704 : index
    %c0_78 = arith.constant 0 : index
    %249 = vector.load %arg2[%c704, %c0_78] : memref<1264x256xf32, #tpu.memory_space<vmem>>, vector<64x64xf32>
    %cst_79 = arith.constant dense<0.000000e+00> : vector<10x64xf32>
    %250 = tpu.matmul %248, %249, %cst_79 {dimension_numbers = #tpu.dot_dimension_numbers<[1], [0], [0], [1], [0, 0, 1, 1], [], []>} : vector<10x64xf32>, vector<64x64xf32>, vector<10x64xf32> -> vector<10x64xf32>
    %c768 = arith.constant 768 : index
    %c0_80 = arith.constant 0 : index
    %251 = vector.load %arg2[%c768, %c0_80] : memref<1264x256xf32, #tpu.memory_space<vmem>>, vector<1x64xf32>
    %252 = vector.broadcast %251 : vector<1x64xf32> to vector<10x64xf32>
    %253 = arith.addf %250, %252 : vector<10x64xf32>
    %254 = arith.addf %154, %253 : vector<10x64xf32>
    %c776 = arith.constant 776 : index
    %c0_81 = arith.constant 0 : index
    %255 = vector.load %arg2[%c776, %c0_81] : memref<1264x256xf32, #tpu.memory_space<vmem>>, vector<1x64xf32>
    %c784 = arith.constant 784 : index
    %c0_82 = arith.constant 0 : index
    %256 = vector.load %arg2[%c784, %c0_82] : memref<1264x256xf32, #tpu.memory_space<vmem>>, vector<1x64xf32>
    %cst_83 = arith.constant dense<0.000000e+00> : vector<10xf32>
    %257 = vector.multi_reduction <add>, %254, %cst_83 [1] : vector<10x64xf32> to vector<10xf32>
    %258 = vector.shape_cast %257 : vector<10xf32> to vector<10x1xf32>
    %cst_84 = arith.constant 6.400000e+01 : f32
    %259 = vector.broadcast %cst_84 : f32 to vector<10x1xf32>
    %260 = arith.divf %258, %259 : vector<10x1xf32>
    %261 = vector.broadcast %260 : vector<10x1xf32> to vector<10x64xf32>
    %262 = arith.subf %254, %261 : vector<10x64xf32>
    %263 = arith.mulf %262, %262 : vector<10x64xf32>
    %cst_85 = arith.constant dense<0.000000e+00> : vector<10xf32>
    %264 = vector.multi_reduction <add>, %263, %cst_85 [1] : vector<10x64xf32> to vector<10xf32>
    %265 = vector.shape_cast %264 : vector<10xf32> to vector<10x1xf32>
    %cst_86 = arith.constant 6.400000e+01 : f32
    %266 = vector.broadcast %cst_86 : f32 to vector<10x1xf32>
    %267 = arith.divf %265, %266 : vector<10x1xf32>
    %268 = vector.broadcast %260 : vector<10x1xf32> to vector<10x64xf32>
    %269 = arith.subf %254, %268 : vector<10x64xf32>
    %cst_87 = arith.constant 9.99999974E-6 : f32
    %270 = vector.broadcast %cst_87 : f32 to vector<10x1xf32>
    %271 = arith.addf %267, %270 : vector<10x1xf32>
    %272 = math.rsqrt %271 : vector<10x1xf32>
    %273 = vector.broadcast %272 : vector<10x1xf32> to vector<10x64xf32>
    %274 = arith.mulf %269, %273 : vector<10x64xf32>
    %275 = vector.broadcast %255 : vector<1x64xf32> to vector<10x64xf32>
    %276 = arith.mulf %274, %275 : vector<10x64xf32>
    %277 = vector.broadcast %256 : vector<1x64xf32> to vector<10x64xf32>
    %278 = arith.addf %276, %277 : vector<10x64xf32>
    %c792 = arith.constant 792 : index
    %c0_88 = arith.constant 0 : index
    %279 = vector.load %arg2[%c792, %c0_88] : memref<1264x256xf32, #tpu.memory_space<vmem>>, vector<64x256xf32>
    %cst_89 = arith.constant dense<0.000000e+00> : vector<10x256xf32>
    %280 = tpu.matmul %278, %279, %cst_89 {dimension_numbers = #tpu.dot_dimension_numbers<[1], [0], [0], [1], [0, 0, 1, 1], [], []>} : vector<10x64xf32>, vector<64x256xf32>, vector<10x256xf32> -> vector<10x256xf32>
    %c856 = arith.constant 856 : index
    %c0_90 = arith.constant 0 : index
    %281 = vector.load %arg2[%c856, %c0_90] : memref<1264x256xf32, #tpu.memory_space<vmem>>, vector<1x256xf32>
    %282 = vector.broadcast %281 : vector<1x256xf32> to vector<10x256xf32>
    %283 = arith.addf %280, %282 : vector<10x256xf32>
    %cst_91 = arith.constant 5.000000e-01 : f32
    %284 = vector.broadcast %cst_91 : f32 to vector<10x256xf32>
    %285 = arith.mulf %284, %283 : vector<10x256xf32>
    %cst_92 = arith.constant 4.471500e-02 : f32
    %286 = vector.broadcast %cst_92 : f32 to vector<10x256xf32>
    %287 = arith.mulf %286, %283 : vector<10x256xf32>
    %288 = arith.mulf %287, %283 : vector<10x256xf32>
    %289 = arith.mulf %288, %283 : vector<10x256xf32>
    %290 = arith.addf %283, %289 : vector<10x256xf32>
    %cst_93 = arith.constant 0.797884583 : f32
    %291 = vector.broadcast %cst_93 : f32 to vector<10x256xf32>
    %292 = arith.mulf %291, %290 : vector<10x256xf32>
    %293 = math.tanh %292 : vector<10x256xf32>
    %cst_94 = arith.constant 1.000000e+00 : f32
    %294 = vector.broadcast %cst_94 : f32 to vector<10x256xf32>
    %295 = arith.addf %294, %293 : vector<10x256xf32>
    %296 = arith.mulf %285, %295 : vector<10x256xf32>
    %c864 = arith.constant 864 : index
    %c0_95 = arith.constant 0 : index
    %297 = vector.load %arg2[%c864, %c0_95] : memref<1264x256xf32, #tpu.memory_space<vmem>>, vector<256x64xf32>
    %cst_96 = arith.constant dense<0.000000e+00> : vector<10x64xf32>
    %298 = tpu.matmul %296, %297, %cst_96 {dimension_numbers = #tpu.dot_dimension_numbers<[1], [0], [0], [1], [0, 0, 1, 1], [], []>} : vector<10x256xf32>, vector<256x64xf32>, vector<10x64xf32> -> vector<10x64xf32>
    %c1120 = arith.constant 1120 : index
    %c0_97 = arith.constant 0 : index
    %299 = vector.load %arg2[%c1120, %c0_97] : memref<1264x256xf32, #tpu.memory_space<vmem>>, vector<1x64xf32>
    %300 = vector.broadcast %299 : vector<1x64xf32> to vector<10x64xf32>
    %301 = arith.addf %298, %300 : vector<10x64xf32>
    %302 = arith.addf %254, %301 : vector<10x64xf32>
    %c96 = arith.constant 96 : index
    %c0_98 = arith.constant 0 : index
    %303 = vector.load %arg2[%c96, %c0_98] : memref<1264x256xf32, #tpu.memory_space<vmem>>, vector<2x10xf32>
    %cst_99 = arith.constant dense<0.000000e+00> : vector<2x64xf32>
    %304 = tpu.matmul %303, %302, %cst_99 {dimension_numbers = #tpu.dot_dimension_numbers<[1], [0], [0], [1], [0, 0, 1, 1], [], []>} : vector<2x10xf32>, vector<10x64xf32>, vector<2x64xf32> -> vector<2x64xf32>
    %c1128 = arith.constant 1128 : index
    %c0_100 = arith.constant 0 : index
    %305 = vector.load %arg2[%c1128, %c0_100] : memref<1264x256xf32, #tpu.memory_space<vmem>>, vector<1x64xf32>
    %c1136 = arith.constant 1136 : index
    %c0_101 = arith.constant 0 : index
    %306 = vector.load %arg2[%c1136, %c0_101] : memref<1264x256xf32, #tpu.memory_space<vmem>>, vector<1x64xf32>
    %cst_102 = arith.constant dense<0.000000e+00> : vector<2xf32>
    %307 = vector.multi_reduction <add>, %304, %cst_102 [1] : vector<2x64xf32> to vector<2xf32>
    %308 = vector.shape_cast %307 : vector<2xf32> to vector<2x1xf32>
    %cst_103 = arith.constant 6.400000e+01 : f32
    %309 = vector.broadcast %cst_103 : f32 to vector<2x1xf32>
    %310 = arith.divf %308, %309 : vector<2x1xf32>
    %311 = vector.broadcast %310 : vector<2x1xf32> to vector<2x64xf32>
    %312 = arith.subf %304, %311 : vector<2x64xf32>
    %313 = arith.mulf %312, %312 : vector<2x64xf32>
    %cst_104 = arith.constant dense<0.000000e+00> : vector<2xf32>
    %314 = vector.multi_reduction <add>, %313, %cst_104 [1] : vector<2x64xf32> to vector<2xf32>
    %315 = vector.shape_cast %314 : vector<2xf32> to vector<2x1xf32>
    %cst_105 = arith.constant 6.400000e+01 : f32
    %316 = vector.broadcast %cst_105 : f32 to vector<2x1xf32>
    %317 = arith.divf %315, %316 : vector<2x1xf32>
    %318 = vector.broadcast %310 : vector<2x1xf32> to vector<2x64xf32>
    %319 = arith.subf %304, %318 : vector<2x64xf32>
    %cst_106 = arith.constant 9.99999974E-6 : f32
    %320 = vector.broadcast %cst_106 : f32 to vector<2x1xf32>
    %321 = arith.addf %317, %320 : vector<2x1xf32>
    %322 = math.rsqrt %321 : vector<2x1xf32>
    %323 = vector.broadcast %322 : vector<2x1xf32> to vector<2x64xf32>
    %324 = arith.mulf %319, %323 : vector<2x64xf32>
    %325 = vector.broadcast %305 : vector<1x64xf32> to vector<2x64xf32>
    %326 = arith.mulf %324, %325 : vector<2x64xf32>
    %327 = vector.broadcast %306 : vector<1x64xf32> to vector<2x64xf32>
    %328 = arith.addf %326, %327 : vector<2x64xf32>
    %c1144 = arith.constant 1144 : index
    %c0_107 = arith.constant 0 : index
    %329 = vector.load %arg2[%c1144, %c0_107] : memref<1264x256xf32, #tpu.memory_space<vmem>>, vector<64x40xf32>
    %cst_108 = arith.constant dense<0.000000e+00> : vector<2x40xf32>
    %330 = tpu.matmul %328, %329, %cst_108 {dimension_numbers = #tpu.dot_dimension_numbers<[1], [0], [0], [1], [0, 0, 1, 1], [], []>} : vector<2x64xf32>, vector<64x40xf32>, vector<2x40xf32> -> vector<2x40xf32>
    %c1208 = arith.constant 1208 : index
    %c0_109 = arith.constant 0 : index
    %331 = vector.load %arg2[%c1208, %c0_109] : memref<1264x256xf32, #tpu.memory_space<vmem>>, vector<1x40xf32>
    %332 = vector.broadcast %331 : vector<1x40xf32> to vector<2x40xf32>
    %333 = arith.addf %330, %332 : vector<2x40xf32>
    %cst_110 = arith.constant 5.000000e-01 : f32
    %334 = vector.broadcast %cst_110 : f32 to vector<2x40xf32>
    %335 = arith.mulf %334, %333 : vector<2x40xf32>
    %cst_111 = arith.constant 4.471500e-02 : f32
    %336 = vector.broadcast %cst_111 : f32 to vector<2x40xf32>
    %337 = arith.mulf %336, %333 : vector<2x40xf32>
    %338 = arith.mulf %337, %333 : vector<2x40xf32>
    %339 = arith.mulf %338, %333 : vector<2x40xf32>
    %340 = arith.addf %333, %339 : vector<2x40xf32>
    %cst_112 = arith.constant 0.797884583 : f32
    %341 = vector.broadcast %cst_112 : f32 to vector<2x40xf32>
    %342 = arith.mulf %341, %340 : vector<2x40xf32>
    %343 = math.tanh %342 : vector<2x40xf32>
    %cst_113 = arith.constant 1.000000e+00 : f32
    %344 = vector.broadcast %cst_113 : f32 to vector<2x40xf32>
    %345 = arith.addf %344, %343 : vector<2x40xf32>
    %346 = arith.mulf %335, %345 : vector<2x40xf32>
    %c1216 = arith.constant 1216 : index
    %c0_114 = arith.constant 0 : index
    %347 = vector.load %arg2[%c1216, %c0_114] : memref<1264x256xf32, #tpu.memory_space<vmem>>, vector<40x10xf32>
    %cst_115 = arith.constant dense<0.000000e+00> : vector<2x10xf32>
    %348 = tpu.matmul %346, %347, %cst_115 {dimension_numbers = #tpu.dot_dimension_numbers<[1], [0], [0], [1], [0, 0, 1, 1], [], []>} : vector<2x40xf32>, vector<40x10xf32>, vector<2x10xf32> -> vector<2x10xf32>
    %c1256 = arith.constant 1256 : index
    %c0_116 = arith.constant 0 : index
    %349 = vector.load %arg2[%c1256, %c0_116] : memref<1264x256xf32, #tpu.memory_space<vmem>>, vector<1x10xf32>
    %350 = vector.broadcast %349 : vector<1x10xf32> to vector<2x10xf32>
    %351 = arith.addf %348, %350 : vector<2x10xf32>
    %c0_117 = arith.constant 0 : index
    %c0_118 = arith.constant 0 : index
    %c0_119 = arith.constant 0 : index
    %352 = vector.load %arg3[%c0_117, %c0_118, %c0_119] : memref<1x2x10xf32, #tpu.memory_space<vmem>>, vector<1x2x10xf32>
    %353 = vector.shape_cast %352 : vector<1x2x10xf32> to vector<2x10xf32>
    %354 = vector.shape_cast %351 : vector<2x10xf32> to vector<1x2x10xf32>
    tpu.vector_store %arg3[%c0_117, %c0_118, %c0_119], %354 {strides = array<i32>} : memref<1x2x10xf32, #tpu.memory_space<vmem>>, vector<1x2x10xf32>,
    return
  }
  func.func @transform_0(%arg0: i32) -> (i32, i32, i32) {
    %c0_i32 = arith.constant 0 : i32
    %c0_i32_0 = arith.constant 0 : i32
    %c0_i32_1 = arith.constant 0 : i32
    return %arg0, %c0_i32, %c0_i32_0 : i32, i32, i32
  }
  func.func @transform_1(%arg0: i32) -> (i32, i32) {
    %c0_i32 = arith.constant 0 : i32
    %c0_i32_0 = arith.constant 0 : i32
    %c0_i32_1 = arith.constant 0 : i32
    return %c0_i32, %c0_i32_0 : i32, i32
  }
  func.func @transform_2(%arg0: i32) -> (i32, i32, i32) {
    %c0_i32 = arith.constant 0 : i32
    %c0_i32_0 = arith.constant 0 : i32
    %c0_i32_1 = arith.constant 0 : i32
    return %arg0, %c0_i32, %c0_i32_0 : i32, i32, i32
  }
}

</mosaic_0001>

<llo_original>
// kernel: tpu_custom_call.1
$region0: #{tpu_custom_call.1}
  #allocation0 [shape = 'u32[]', space=smem, size = 0x4, offset = 0x4, fixed_abs, tag = 'smem constant byte address 0x4 - core index']
  #allocation1 [shape = 'u32[72,128]{1,0:T(1,128)}', space=vmem, size = 0x9000, scoped, tag = 'internal scratch']
  %s0 = inlined_call_operand.hbm [shape: f32[8,128], index: 0, kind: input, shape index: {}]
  %s1 = inlined_call_operand.hbm [shape: f32[8,128], index: 1, kind: output, shape index: {}]
  %s2 = sld [smem:[#allocation0]]
  $region18: #{tpu_custom_call.1} parent=0
    _
  %s4 = ssub.s32 1, %s2
  %s5 = scalar_select 0, %s4, %s2
  $region1: #{tpu_custom_call.1} parent=0
    #allocation2 [shape = 'u8[4096]{0}', space=vmem, size = 0x1000, scoped, tag = 'input window, operand 0, single buffered']
    #allocation3 [shape = 's32[1]{0}', space=sflag, size = 0x4, scoped, tag = 'scoped memory for tpu_custom_call.1']
    #allocation4 [shape = 's32[1]{0}', space=sflag, size = 0x4, scoped, tag = 'scoped memory for tpu_custom_call.1']
    #allocation5 [shape = 'u8[4096]{0}', space=vmem, size = 0x1000, scoped, tag = 'output window, operand 0, single buffered']
    %6 = vsyncpa [#allocation3], 0
    %7 = vsyncpa [#allocation4], 0
    // Predicated region
    $region2: #{tpu_custom_call.1} parent=1 // pred_check
      _
    $region3: #{tpu_custom_call.1} parent=1 // pred_check_branch
      %9 = sbr.rel (0) target = $region5
    $region4: #{tpu_custom_call.1} parent=1 // pred_region
      %11 = vsyncadd [#allocation3], 0
      %s13 = sshll.u32 %s0, 4
      %s14 = int_to_ptr.hbm [resolvable:$true] %s13
      %s15 = sshll.u32 [#allocation2], 4
      %s16 = int_to_ptr.vmem [resolvable:$true] %s15
      %18 = dma.hbm_to_vmem [thread:$0]  %s14, 128, %s16, [#allocation3]
    $region5: #{tpu_custom_call.1} parent=1 // pred_fallthru
      _
    // Predicated region
    $region6: #{tpu_custom_call.1} parent=1 // pred_check
      _
    $region7: #{tpu_custom_call.1} parent=1 // pred_check_branch
      %20 = sbr.rel (0) target = $region9
    $region8: #{tpu_custom_call.1} parent=1 // pred_region
      %22 = dma.done [#allocation3], 128
    $region9: #{tpu_custom_call.1} parent=1 // pred_fallthru
      _
    %v23 = vld [vmem:[#allocation2] sm:$0xff]
    %v24 = vmul.f32 %v23, %v23
    %v25 = vmin.f32 16.0, %v24
    %v26 = vmul.f32 %v25, 2.1237322e-06
    %v27 = vadd.f32 %v26, 0.00028619796
    %v28 = vmul.f32 %v25, %v27
    %v29 = vadd.f32 %v28, 0.0036580483
    %v30 = vmul.f32 %v25, %v29
    %v31 = vadd.f32 %v30, 0.05243302
    %v32 = vmul.f32 %v25, %v31
    %v33 = vadd.f32 %v32, 0.18741608
    %v34 = vmul.f32 %v25, %v33
    %v35 = vadd.f32 %v34, 1.1283791
    %v36 = vmul.f32 %v23, %v35
    %v37 = vmul.f32 %v25, 3.8918573e-05
    %v38 = vadd.f32 %v37, 0.001143296
    %v39 = vmul.f32 %v25, %v38
    %v40 = vadd.f32 %v39, 0.014752088
    %v41 = vmul.f32 %v25, %v40
    %v42 = vadd.f32 %v41, 0.112945676
    %v43 = vmul.f32 %v25, %v42
    %v44 = vadd.f32 %v43, 0.4994258
    %v45 = vmul.f32 %v25, %v44
    %v46 = vadd.f32 %v45, 1.0
    %v47 = vrcp.pop %v46
    %v48 = vmul.f32 %v46, %v47
    %v49 = vsub.f32 1.0, %v48
    %v50 = vmul.f32 %v47, %v49
    %v51 = vadd.f32 %v47, %v50
    %vm52 = vweird.f32 %v46
    %vm53 = vweird.f32 %v47
    %vm54 = vmor %vm52, %vm53
    %v55 = vsel %vm54, %v47, %v51
    %v56 = vand.u32 2147483647, %v46
    %vm57 = vcmp.eq.f32.partialorder %v56, 8.507059e+37
    %v58 = vand.u32 %v46, 2147483648
    %v59 = vor.u32 1.1754944e-38, %v58
    %v60 = vsel %vm57, %v59, %v55
    %v61 = vmul.f32 %v36, %v60
    %v62 = vmin.f32 %v61, 1.0
    %v63 = vmax.f32 %v62, -1.0
    %64 = vst [vmem:[#allocation5] sm:$0xff] %v63
    // Predicated region
    $region10: #{tpu_custom_call.1} parent=1 // pred_check
      _
    $region11: #{tpu_custom_call.1} parent=1 // pred_check_branch
      %66 = sbr.rel (0) target = $region13
    $region12: #{tpu_custom_call.1} parent=1 // pred_region
      %68 = vsyncadd [#allocation4], 0
      %s70 = sshll.u32 [#allocation5], 4
      %s71 = int_to_ptr.vmem [resolvable:$true] %s70
      %s72 = sshll.u32 %s1, 4
      %s73 = int_to_ptr.hbm [resolvable:$true] %s72
      %75 = dma.vmem_to_hbm [thread:$0]  %s71, 128, %s73, [#allocation4]
    $region13: #{tpu_custom_call.1} parent=1 // pred_fallthru
      _
    // Predicated region
    $region14: #{tpu_custom_call.1} parent=1 // pred_check
      _
    $region15: #{tpu_custom_call.1} parent=1 // pred_check_branch
      %77 = sbr.rel (0) target = $region17
    $region16: #{tpu_custom_call.1} parent=1 // pred_region
      %79 = dma.done [#allocation4], 128
    $region17: #{tpu_custom_call.1} parent=1 // pred_fallthru
      _
    %80 = vsyncpa [#allocation3], 1
    %81 = vsyncpa [#allocation4], 1

// kernel: tpu_custom_call.1
$region0: #{tpu_custom_call.1}
  #allocation0 [shape = 'u32[]', space=smem, size = 0x4, offset = 0x4, fixed_abs, tag = 'smem constant byte address 0x4 - core index']
  #allocation1 [shape = 'u32[72,128]{1,0:T(1,128)}', space=vmem, size = 0x9000, scoped, tag = 'internal scratch']
  %s0 = inlined_call_operand.vmem [shape: f32[1,10,64], index: 0, kind: input, shape index: {}]
  %s1 = inlined_call_operand.hbm [shape: f32[1264,256], index: 1, kind: input, shape index: {}]
  %s2 = inlined_call_operand.hbm [shape: f32[1,2,10], index: 2, kind: output, shape index: {}]
  %s3 = sld [smem:[#allocation0]]
  $region22: #{tpu_custom_call.1} parent=0
    _
  %s5 = ssub.s32 1, %s3
  %s6 = scalar_select 0, %s5, %s3
  $region1: #{tpu_custom_call.1} parent=0
    #allocation2 [shape = 'u8[1294336]{0}', space=vmem, size = 0x13c000, scoped, tag = 'input window, operand 1, single buffered']
    #allocation3 [shape = 's32[1]{0}', space=sflag, size = 0x4, scoped, tag = 'scoped memory for tpu_custom_call.1']
    #allocation4 [shape = 's32[1]{0}', space=sflag, size = 0x4, scoped, tag = 'scoped memory for tpu_custom_call.1']
    #allocation5 [shape = 'u8[1024]{0}', space=vmem, size = 0x400, scoped, tag = 'output window, operand 0, single buffered']
    %7 = vsyncpa [#allocation3], 0
    %8 = vsyncpa [#allocation4], 0
    // Predicated region
    $region2: #{tpu_custom_call.1} parent=1 // pred_check
      _
    $region3: #{tpu_custom_call.1} parent=1 // pred_check_branch
      %10 = sbr.rel (0) target = $region5
    $region4: #{tpu_custom_call.1} parent=1 // pred_region
      _
    $region5: #{tpu_custom_call.1} parent=1 // pred_fallthru
      _
    // Predicated region
    $region6: #{tpu_custom_call.1} parent=1 // pred_check
      _
    $region7: #{tpu_custom_call.1} parent=1 // pred_check_branch
      %12 = sbr.rel (0) target = $region9
    $region8: #{tpu_custom_call.1} parent=1 // pred_region
      %14 = vsyncadd [#allocation3], 0
      %s15 = sshll.u32 %s1, 4
      %s16 = int_to_ptr.hbm [resolvable:$true] %s15
      %s17 = sshll.u32 [#allocation2], 4
      %s18 = int_to_ptr.vmem [resolvable:$true] %s17
      %23 = dma.hbm_to_vmem [thread:$0]  %s16, 40448, %s18, [#allocation3], 256, 256, 16
    $region9: #{tpu_custom_call.1} parent=1 // pred_fallthru
      _
    // Predicated region
    $region10: #{tpu_custom_call.1} parent=1 // pred_check
      _
    $region11: #{tpu_custom_call.1} parent=1 // pred_check_branch
      %25 = sbr.rel (0) target = $region13
    $region12: #{tpu_custom_call.1} parent=1 // pred_region
      %27 = dma.done [#allocation3], 40448
    $region13: #{tpu_custom_call.1} parent=1 // pred_fallthru
      _
    %v28 = vld [vmem:[%s0] sm:$0xff]
    %v29 = vld [vmem:[%s0 + $0x8] sm:$0x3]
    %v30 = vld [vmem:[#allocation2] sm:$0xff]
    %v31 = vld [vmem:[#allocation2 + $0x10] sm:$0xff]
    %v32 = vld [vmem:[#allocation2 + $0x20] sm:$0xff]
    %v33 = vld [vmem:[#allocation2 + $0x30] sm:$0xff]
    %v34 = vld [vmem:[#allocation2 + $0x40] sm:$0xff]
    %v35 = vld [vmem:[#allocation2 + $0x50] sm:$0xff]
    %v36 = vld [vmem:[#allocation2 + $0x60] sm:$0xff]
    %v37 = vld [vmem:[#allocation2 + $0x70] sm:$0xff]
    %v38 = vld [vmem:[#allocation2 + $0x80] sm:$0xff]
    %v39 = vld [vmem:[#allocation2 + $0x90] sm:$0x3]
    %vm40 = vcmask 523264
    %v42 = vsel %vm40, %v28, 0
    %v45 = vsel %vm40, %v29, 0
    %47 = vmatpush.msra.mxu0 0.0
    %48 = vmatpush.msra.mxu0 0.0
    %49 = vmatpush.msra.mxu0 0.0
    %50 = vmatpush.msra.mxu0 0.0
    %51 = vmatpush.msra.mxu0 0.0
    %52 = vmatpush.msra.mxu0 0.0
    %53 = vmatpush.msra.mxu0 0.0
    %54 = vmatpush.msra.mxu0 0.0
    %55 = vmatpush.msra.mxu0 %v37
    %56 = vmatpush.msra.mxu0 %v36
    %57 = vmatpush.msra.mxu0 %v35
    %58 = vmatpush.msra.mxu0 %v34
    %59 = vmatpush.msra.mxu0 %v33
    %60 = vmatpush.msra.mxu0 %v32
    %61 = vmatpush.msra.mxu0 %v31
    %62 = vmatpush.msra.mxu0 %v30
    %63 = vmatmul.f32.gmra.mxu0 %v42
    %v64 = vpop.f32.mrf.mxu0
    %v65 = vadd.f32 %v38, %v64
    %66 = vmatmul.f32.gmra.mxu0 %v45
    %v67 = vpop.f32.mrf.mxu0
    %v68 = vadd.f32 %v39, %v67
    %69 = vdwg.mxu0
    %v70 = vld [vmem:[#allocation2 + $0xa0] sm:$0xff]
    %v71 = vld [vmem:[#allocation2 + $0xb0] sm:$0x3]
    %v72 = vld [vmem:[#allocation2 + $0xd0] ss:$0 sm:$0xff]
    %v73 = vld [vmem:[#allocation2 + $0xe0] ss:$0 sm:$0xff]
    %v74 = vsel %vm40, %v65, 0.0
    %75 = vadd.xlane.f32.xlu0 %v74
    %v76 = vpop.xlane.xlu0 %75
    %vm77 = vcmask 517120
    %v78 = vsel %vm77, %v68, 0.0
    %79 = vadd.xlane.f32.xlu0 %v78
    %v80 = vpop.xlane.xlu0 %79
    %v81 = vrcp.pop 64.0
    %v82 = vmul.f32 64.0, %v81
    %v83 = vsub.f32 1.0, %v82
    %v84 = vmul.f32 %v81, %v83
    %v85 = vadd.f32 %v81, %v84
    %vm86 = vweird.f32 %v81
    %v87 = vsel %vm86, %v81, %v85
    %v88 = vmul.f32 %v76, %v87
    %v89 = vmul.f32 %v80, %v87
    %v90 = vsub.f32 %v65, %v88
    %v91 = vsub.f32 %v68, %v89
    %v92 = vmul.f32 %v90, %v90
    %v93 = vmul.f32 %v91, %v91
    %v94 = vsel %vm40, %v92, 0.0
    %95 = vadd.xlane.f32.xlu0 %v94
    %v96 = vpop.xlane.xlu0 %95
    %v97 = vsel %vm77, %v93, 0.0
    %98 = vadd.xlane.f32.xlu0 %v97
    %v99 = vpop.xlane.xlu0 %98
    %v100 = vmul.f32 %v96, %v87
    %v101 = vmul.f32 %v99, %v87
    %v102 = vadd.f32 %v100, 1e-05
    %v103 = vadd.f32 %v101, 1e-05
    %v104 = vrsqrt.pop %v102
    %v105 = vmul.f32 %v104, %v102
    %v106 = vmul.f32 %v105, %v104
    %v107 = vmul.f32 0.5, %v106
    %v108 = vsub.f32 1.5, %v107
    %v109 = vmul.f32 %v104, %v108
    %vm110 = vweird.f32 %v102
    %vm111 = vweird.f32 %v104
    %vm112 = vmor %vm110, %vm111
    %v113 = vsel %vm112, %v104, %v109
    %v114 = vrsqrt.pop %v103
    %v115 = vmul.f32 %v114, %v103
    %v116 = vmul.f32 %v115, %v114
    %v117 = vmul.f32 0.5, %v116
    %v118 = vsub.f32 1.5, %v117
    %v119 = vmul.f32 %v114, %v118
    %vm120 = vweird.f32 %v103
    %vm121 = vweird.f32 %v114
    %vm122 = vmor %vm120, %vm121
    %v123 = vsel %vm122, %v114, %v119
    %v124 = vmul.f32 %v90, %v113
    %v125 = vmul.f32 %v91, %v123
    %v126 = vmul.f32 %v124, %v72
    %v127 = vmul.f32 %v125, %v72
    %v128 = vadd.f32 %v126, %v73
    %v129 = vadd.f32 %v127, %v73
    %v130 = vld [vmem:[#allocation2 + $0xf0] sm:$0xff]
    %v131 = vld [vmem:[#allocation2 + $0xf8] sm:$0xff]
    %v132 = vld [vmem:[#allocation2 + $0x100] sm:$0xff]
    %v133 = vld [vmem:[#allocation2 + $0x108] sm:$0xff]
    %v134 = vld [vmem:[#allocation2 + $0x110] sm:$0xff]
    %v135 = vld [vmem:[#allocation2 + $0x118] sm:$0xff]
    %v136 = vld [vmem:[#allocation2 + $0x120] sm:$0xff]
    %v137 = vld [vmem:[#allocation2 + $0x128] sm:$0xff]
    %v138 = vld [vmem:[#allocation2 + $0x130] sm:$0xff]
    %v139 = vld [vmem:[#allocation2 + $0x138] sm:$0xff]
    %v140 = vld [vmem:[#allocation2 + $0x140] sm:$0xff]
    %v141 = vld [vmem:[#allocation2 + $0x148] sm:$0xff]
    %v142 = vld [vmem:[#allocation2 + $0x150] sm:$0xff]
    %v143 = vld [vmem:[#allocation2 + $0x158] sm:$0xff]
    %v144 = vld [vmem:[#allocation2 + $0x160] sm:$0xff]
    %v145 = vld [vmem:[#allocation2 + $0x168] sm:$0xff]
    %s146 = scalar_lea.vmem [#allocation2], 368
    %v147 = vld [vmem:[%s146] ss:$8 sm:$0x3]
    %v149 = vperm.slane %v147, 0
    %v150 = vperm.slane %v147, 1
    %v154 = vsel %vm40, %v128, 0
    %v157 = vsel %vm40, %v129, 0
    %159 = vmatpush.msra.mxu0 0.0
    %160 = vmatpush.msra.mxu0 0.0
    %161 = vmatpush.msra.mxu0 0.0
    %162 = vmatpush.msra.mxu0 0.0
    %163 = vmatpush.msra.mxu0 0.0
    %164 = vmatpush.msra.mxu0 0.0
    %165 = vmatpush.msra.mxu0 0.0
    %166 = vmatpush.msra.mxu0 0.0
    %167 = vmatpush.msra.mxu0 %v144
    %168 = vmatpush.msra.mxu0 %v142
    %169 = vmatpush.msra.mxu0 %v140
    %170 = vmatpush.msra.mxu0 %v138
    %171 = vmatpush.msra.mxu0 %v136
    %172 = vmatpush.msra.mxu0 %v134
    %173 = vmatpush.msra.mxu0 %v132
    %174 = vmatpush.msra.mxu0 %v130
    %175 = vmatmul.f32.gmra.mxu0 %v154
    %v176 = vpop.f32.mrf.mxu0
    %v177 = vadd.f32 %v149, %v176
    %178 = vmatmul.f32.gmra.mxu0 %v157
    %v179 = vpop.f32.mrf.mxu0
    %v180 = vadd.f32 %v149, %v179
    %181 = vdwg.mxu0
    %182 = vmatpush.msra.mxu0 0.0
    %183 = vmatpush.msra.mxu0 0.0
    %184 = vmatpush.msra.mxu0 0.0
    %185 = vmatpush.msra.mxu0 0.0
    %186 = vmatpush.msra.mxu0 0.0
    %187 = vmatpush.msra.mxu0 0.0
    %188 = vmatpush.msra.mxu0 0.0
    %189 = vmatpush.msra.mxu0 0.0
    %190 = vmatpush.msra.mxu0 %v145
    %191 = vmatpush.msra.mxu0 %v143
    %192 = vmatpush.msra.mxu0 %v141
    %193 = vmatpush.msra.mxu0 %v139
    %194 = vmatpush.msra.mxu0 %v137
    %195 = vmatpush.msra.mxu0 %v135
    %196 = vmatpush.msra.mxu0 %v133
    %197 = vmatpush.msra.mxu0 %v131
    %198 = vmatmul.f32.gmra.mxu0 %v154
    %v199 = vpop.f32.mrf.mxu0
    %v200 = vadd.f32 %v150, %v199
    %201 = vmatmul.f32.gmra.mxu0 %v157
    %v202 = vpop.f32.mrf.mxu0
    %v203 = vadd.f32 %v150, %v202
    %204 = vdwg.mxu0
    %207 = vrot.lane.b32.xlu0 %v177, 64
    %v208 = vpop.permute.xlu0 %207
    %209 = vrot.lane.b32.xlu0 %v180, 64
    %v210 = vpop.permute.xlu0 %209
    %vm211 = vcmask 130048
    %v212 = vsel %vm211, %v177, 0
    %v214 = vsel %vm211, %v180, 0
    %v216 = vsel %vm211, %v208, 0
    %v218 = vsel %vm211, %v210, 0
    %220 = vmatpush.xpose.msra.mxu0 0.0
    %221 = vmatpush.xpose.msra.mxu0 0.0
    %222 = vmatpush.xpose.msra.mxu0 0.0
    %223 = vmatpush.xpose.msra.mxu0 0.0
    %224 = vmatpush.xpose.msra.mxu0 0.0
    %225 = vmatpush.xpose.msra.mxu0 0.0
    %226 = vmatpush.xpose.msra.mxu0 0.0
    %227 = vmatpush.xpose.msra.mxu0 0.0
    %228 = vmatpush.xpose.msra.mxu0 0.0
    %229 = vmatpush.xpose.msra.mxu0 0.0
    %230 = vmatpush.xpose.msra.mxu0 0.0
    %231 = vmatpush.xpose.msra.mxu0 0.0
    %232 = vmatpush.xpose.msra.mxu0 0.0
    %233 = vmatpush.xpose.msra.mxu0 0.0
    %234 = vmatpush.xpose.msra.mxu0 %v218
    %235 = vmatpush.xpose.msra.mxu0 %v216
    %236 = vmatmul.f32.gmra.mxu0 %v212
    %v237 = vpop.f32.mrf.mxu0
    %v238 = vadd.f32 %v70, %v237
    %239 = vmatmul.f32.gmra.mxu0 %v214
    %v240 = vpop.f32.mrf.mxu0
    %v241 = vadd.f32 %v71, %v240
    %242 = vdwg.mxu0
    %vm243 = vcmask 80896
    %v244 = vsel %vm243, %v238, -inf
    %245 = vmax.xlane.f32.xlu0 %v244
    %v246 = vpop.xlane.xlu0 %245
    %vm247 = vcmask 74752
    %v248 = vsel %vm247, %v241, -inf
    %249 = vmax.xlane.f32.xlu0 %v248
    %v250 = vpop.xlane.xlu0 %249
    %v251 = vsub.f32 %v238, %v246
    %v252 = vsub.f32 %v241, %v250
    %v253 = vmul.f32 %v251, 1.442695
    %v254 = vpow.pop %v253
    %v255 = vmul.f32 %v252, 1.442695
    %v256 = vpow.pop %v255
    %v257 = vsel %vm243, %v254, 0.0
    %258 = vadd.xlane.f32.xlu0 %v257
    %v259 = vpop.xlane.xlu0 %258
    %v260 = vsel %vm247, %v256, 0.0
    %261 = vadd.xlane.f32.xlu0 %v260
    %v262 = vpop.xlane.xlu0 %261
    %v263 = vrcp.pop %v259
    %v264 = vrcp.pop %v262
    %v265 = vmul.f32 %v254, %v263
    %v266 = vmul.f32 %v256, %v264
    %v268 = vsel %vm243, %v265, 0
    %v271 = vsel %vm243, %v266, 0
    %vm273 = vcmask 1041408
    %v275 = vsel %vm273, %v203, 0
    %277 = vmatpush.msra.mxu0 0.0
    %278 = vmatpush.msra.mxu0 0.0
    %279 = vmatpush.msra.mxu0 0.0
    %280 = vmatpush.msra.mxu0 0.0
    %281 = vmatpush.msra.mxu0 0.0
    %282 = vmatpush.msra.mxu0 0.0
    %283 = vmatpush.msra.mxu0 0.0
    %284 = vmatpush.msra.mxu0 0.0
    %285 = vmatpush.msra.mxu0 0.0
    %286 = vmatpush.msra.mxu0 0.0
    %287 = vmatpush.msra.mxu0 0.0
    %288 = vmatpush.msra.mxu0 0.0
    %289 = vmatpush.msra.mxu0 0.0
    %290 = vmatpush.msra.mxu0 0.0
    %291 = vmatpush.msra.mxu0 %v275
    %292 = vmatpush.msra.mxu0 %v200
    %293 = vmatmul.f32.gmra.mxu0 %v268
    %v294 = vpop.f32.mrf.mxu0
    %v295 = vadd.f32 0.0, %v294
    %296 = vmatmul.f32.gmra.mxu0 %v271
    %v297 = vpop.f32.mrf.mxu0
    %v298 = vadd.f32 0.0, %v297
    %299 = vdwg.mxu0
    %300 = vrot.lane.b32.xlu0 %v177, 112
    %v301 = vpop.permute.xlu0 %300
    %302 = vrot.lane.b32.xlu0 %v180, 112
    %v303 = vpop.permute.xlu0 %302
    %304 = vrot.lane.b32.xlu0 %v177, 48
    %v305 = vpop.permute.xlu0 %304
    %306 = vrot.lane.b32.xlu0 %v180, 48
    %v307 = vpop.permute.xlu0 %306
    %v308 = vsel %vm211, %v301, 0
    %v310 = vsel %vm211, %v303, 0
    %v312 = vsel %vm211, %v305, 0
    %v314 = vsel %vm211, %v307, 0
    %316 = vmatpush.xpose.msra.mxu0 0.0
    %317 = vmatpush.xpose.msra.mxu0 0.0
    %318 = vmatpush.xpose.msra.mxu0 0.0
    %319 = vmatpush.xpose.msra.mxu0 0.0
    %320 = vmatpush.xpose.msra.mxu0 0.0
    %321 = vmatpush.xpose.msra.mxu0 0.0
    %322 = vmatpush.xpose.msra.mxu0 0.0
    %323 = vmatpush.xpose.msra.mxu0 0.0
    %324 = vmatpush.xpose.msra.mxu0 0.0
    %325 = vmatpush.xpose.msra.mxu0 0.0
    %326 = vmatpush.xpose.msra.mxu0 0.0
    %327 = vmatpush.xpose.msra.mxu0 0.0
    %328 = vmatpush.xpose.msra.mxu0 0.0
    %329 = vmatpush.xpose.msra.mxu0 0.0
    %330 = vmatpush.xpose.msra.mxu0 %v314
    %331 = vmatpush.xpose.msra.mxu0 %v312
    %332 = vmatmul.f32.gmra.mxu0 %v308
    %v333 = vpop.f32.mrf.mxu0
    %v334 = vadd.f32 %v70, %v333
    %335 = vmatmul.f32.gmra.mxu0 %v310
    %v336 = vpop.f32.mrf.mxu0
    %v337 = vadd.f32 %v71, %v336
    %338 = vdwg.mxu0
    %v339 = vsel %vm243, %v334, -inf
    %340 = vmax.xlane.f32.xlu0 %v339
    %v341 = vpop.xlane.xlu0 %340
    %v342 = vsel %vm247, %v337, -inf
    %343 = vmax.xlane.f32.xlu0 %v342
    %v344 = vpop.xlane.xlu0 %343
    %v345 = vsub.f32 %v334, %v341
    %v346 = vsub.f32 %v337, %v344
    %v347 = vmul.f32 %v345, 1.442695
    %v348 = vpow.pop %v347
    %v349 = vmul.f32 %v346, 1.442695
    %v350 = vpow.pop %v349
    %v351 = vsel %vm243, %v348, 0.0
    %352 = vadd.xlane.f32.xlu0 %v351
    %v353 = vpop.xlane.xlu0 %352
    %v354 = vsel %vm247, %v350, 0.0
    %355 = vadd.xlane.f32.xlu0 %v354
    %v356 = vpop.xlane.xlu0 %355
    %v357 = vrcp.pop %v353
    %v358 = vrcp.pop %v356
    %v359 = vmul.f32 %v348, %v357
    %v360 = vmul.f32 %v350, %v358
    %362 = vrot.lane.b32.xlu0 %v200, 112
    %v363 = vpop.permute.xlu0 %362
    %364 = vrot.lane.b32.xlu0 %v203, 112
    %v365 = vpop.permute.xlu0 %364
    %v368 = vsel %vm243, %v359, 0
    %v371 = vsel %vm243, %v360, 0
    %v373 = vsel %vm273, %v365, 0
    %375 = vmatpush.msra.mxu0 0.0
    %376 = vmatpush.msra.mxu0 0.0
    %377 = vmatpush.msra.mxu0 0.0
    %378 = vmatpush.msra.mxu0 0.0
    %379 = vmatpush.msra.mxu0 0.0
    %380 = vmatpush.msra.mxu0 0.0
    %381 = vmatpush.msra.mxu0 0.0
    %382 = vmatpush.msra.mxu0 0.0
    %383 = vmatpush.msra.mxu0 0.0
    %384 = vmatpush.msra.mxu0 0.0
    %385 = vmatpush.msra.mxu0 0.0
    %386 = vmatpush.msra.mxu0 0.0
    %387 = vmatpush.msra.mxu0 0.0
    %388 = vmatpush.msra.mxu0 0.0
    %389 = vmatpush.msra.mxu0 %v373
    %390 = vmatpush.msra.mxu0 %v363
    %391 = vmatmul.f32.gmra.mxu0 %v368
    %v392 = vpop.f32.mrf.mxu0
    %v393 = vadd.f32 0.0, %v392
    %394 = vmatmul.f32.gmra.mxu0 %v371
    %v395 = vpop.f32.mrf.mxu0
    %v396 = vadd.f32 0.0, %v395
    %397 = vdwg.mxu0
    %398 = vrot.lane.b32.xlu0 %v177, 96
    %v399 = vpop.permute.xlu0 %398
    %400 = vrot.lane.b32.xlu0 %v180, 96
    %v401 = vpop.permute.xlu0 %400
    %402 = vrot.lane.b32.xlu0 %v177, 32
    %v403 = vpop.permute.xlu0 %402
    %404 = vrot.lane.b32.xlu0 %v180, 32
    %v405 = vpop.permute.xlu0 %404
    %v406 = vsel %vm211, %v399, 0
    %v408 = vsel %vm211, %v401, 0
    %v410 = vsel %vm211, %v403, 0
    %v412 = vsel %vm211, %v405, 0
    %414 = vmatpush.xpose.msra.mxu0 0.0
    %415 = vmatpush.xpose.msra.mxu0 0.0
    %416 = vmatpush.xpose.msra.mxu0 0.0
    %417 = vmatpush.xpose.msra.mxu0 0.0
    %418 = vmatpush.xpose.msra.mxu0 0.0
    %419 = vmatpush.xpose.msra.mxu0 0.0
    %420 = vmatpush.xpose.msra.mxu0 0.0
    %421 = vmatpush.xpose.msra.mxu0 0.0
    %422 = vmatpush.xpose.msra.mxu0 0.0
    %423 = vmatpush.xpose.msra.mxu0 0.0
    %424 = vmatpush.xpose.msra.mxu0 0.0
    %425 = vmatpush.xpose.msra.mxu0 0.0
    %426 = vmatpush.xpose.msra.mxu0 0.0
    %427 = vmatpush.xpose.msra.mxu0 0.0
    %428 = vmatpush.xpose.msra.mxu0 %v412
    %429 = vmatpush.xpose.msra.mxu0 %v410
    %430 = vmatmul.f32.gmra.mxu0 %v406
    %v431 = vpop.f32.mrf.mxu0
    %v432 = vadd.f32 %v70, %v431
    %433 = vmatmul.f32.gmra.mxu0 %v408
    %v434 = vpop.f32.mrf.mxu0
    %v435 = vadd.f32 %v71, %v434
    %436 = vdwg.mxu0
    %v437 = vsel %vm243, %v432, -inf
    %438 = vmax.xlane.f32.xlu0 %v437
    %v439 = vpop.xlane.xlu0 %438
    %v440 = vsel %vm247, %v435, -inf
    %441 = vmax.xlane.f32.xlu0 %v440
    %v442 = vpop.xlane.xlu0 %441
    %v443 = vsub.f32 %v432, %v439
    %v444 = vsub.f32 %v435, %v442
    %v445 = vmul.f32 %v443, 1.442695
    %v446 = vpow.pop %v445
    %v447 = vmul.f32 %v444, 1.442695
    %v448 = vpow.pop %v447
    %v449 = vsel %vm243, %v446, 0.0
    %450 = vadd.xlane.f32.xlu0 %v449
    %v451 = vpop.xlane.xlu0 %450
    %v452 = vsel %vm247, %v448, 0.0
    %453 = vadd.xlane.f32.xlu0 %v452
    %v454 = vpop.xlane.xlu0 %453
    %v455 = vrcp.pop %v451
    %v456 = vrcp.pop %v454
    %v457 = vmul.f32 %v446, %v455
    %v458 = vmul.f32 %v448, %v456
    %459 = vrot.lane.b32.xlu0 %v200, 96
    %v460 = vpop.permute.xlu0 %459
    %461 = vrot.lane.b32.xlu0 %v203, 96
    %v462 = vpop.permute.xlu0 %461
    %v465 = vsel %vm243, %v457, 0
    %v468 = vsel %vm243, %v458, 0
    %v470 = vsel %vm273, %v462, 0
    %472 = vmatpush.msra.mxu0 0.0
    %473 = vmatpush.msra.mxu0 0.0
    %474 = vmatpush.msra.mxu0 0.0
    %475 = vmatpush.msra.mxu0 0.0
    %476 = vmatpush.msra.mxu0 0.0
    %477 = vmatpush.msra.mxu0 0.0
    %478 = vmatpush.msra.mxu0 0.0
    %479 = vmatpush.msra.mxu0 0.0
    %480 = vmatpush.msra.mxu0 0.0
    %481 = vmatpush.msra.mxu0 0.0
    %482 = vmatpush.msra.mxu0 0.0
    %483 = vmatpush.msra.mxu0 0.0
    %484 = vmatpush.msra.mxu0 0.0
    %485 = vmatpush.msra.mxu0 0.0
    %486 = vmatpush.msra.mxu0 %v470
    %487 = vmatpush.msra.mxu0 %v460
    %488 = vmatmul.f32.gmra.mxu0 %v465
    %v489 = vpop.f32.mrf.mxu0
    %v490 = vadd.f32 0.0, %v489
    %491 = vmatmul.f32.gmra.mxu0 %v468
    %v492 = vpop.f32.mrf.mxu0
    %v493 = vadd.f32 0.0, %v492
    %494 = vdwg.mxu0
    %495 = vrot.lane.b32.xlu0 %v177, 80
    %v496 = vpop.permute.xlu0 %495
    %497 = vrot.lane.b32.xlu0 %v180, 80
    %v498 = vpop.permute.xlu0 %497
    %499 = vrot.lane.b32.xlu0 %v177, 16
    %v500 = vpop.permute.xlu0 %499
    %501 = vrot.lane.b32.xlu0 %v180, 16
    %v502 = vpop.permute.xlu0 %501
    %v503 = vsel %vm211, %v496, 0
    %v505 = vsel %vm211, %v498, 0
    %v507 = vsel %vm211, %v500, 0
    %v509 = vsel %vm211, %v502, 0
    %511 = vmatpush.xpose.msra.mxu0 0.0
    %512 = vmatpush.xpose.msra.mxu0 0.0
    %513 = vmatpush.xpose.msra.mxu0 0.0
    %514 = vmatpush.xpose.msra.mxu0 0.0
    %515 = vmatpush.xpose.msra.mxu0 0.0
    %516 = vmatpush.xpose.msra.mxu0 0.0
    %517 = vmatpush.xpose.msra.mxu0 0.0
    %518 = vmatpush.xpose.msra.mxu0 0.0
    %519 = vmatpush.xpose.msra.mxu0 0.0
    %520 = vmatpush.xpose.msra.mxu0 0.0
    %521 = vmatpush.xpose.msra.mxu0 0.0
    %522 = vmatpush.xpose.msra.mxu0 0.0
    %523 = vmatpush.xpose.msra.mxu0 0.0
    %524 = vmatpush.xpose.msra.mxu0 0.0
    %525 = vmatpush.xpose.msra.mxu0 %v509
    %526 = vmatpush.xpose.msra.mxu0 %v507
    %527 = vmatmul.f32.gmra.mxu0 %v503
    %v528 = vpop.f32.mrf.mxu0
    %v529 = vadd.f32 %v70, %v528
    %530 = vmatmul.f32.gmra.mxu0 %v505
    %v531 = vpop.f32.mrf.mxu0
    %v532 = vadd.f32 %v71, %v531
    %533 = vdwg.mxu0
    %v534 = vsel %vm243, %v529, -inf
    %535 = vmax.xlane.f32.xlu0 %v534
    %v536 = vpop.xlane.xlu0 %535
    %v537 = vsel %vm247, %v532, -inf
    %538 = vmax.xlane.f32.xlu0 %v537
    %v539 = vpop.xlane.xlu0 %538
    %v540 = vsub.f32 %v529, %v536
    %v541 = vsub.f32 %v532, %v539
    %v542 = vmul.f32 %v540, 1.442695
    %v543 = vpow.pop %v542
    %v544 = vmul.f32 %v541, 1.442695
    %v545 = vpow.pop %v544
    %v546 = vsel %vm243, %v543, 0.0
    %547 = vadd.xlane.f32.xlu0 %v546
    %v548 = vpop.xlane.xlu0 %547
    %v549 = vsel %vm247, %v545, 0.0
    %550 = vadd.xlane.f32.xlu0 %v549
    %v551 = vpop.xlane.xlu0 %550
    %v552 = vrcp.pop %v548
    %v553 = vrcp.pop %v551
    %v554 = vmul.f32 %v543, %v552
    %v555 = vmul.f32 %v545, %v553
    %556 = vrot.lane.b32.xlu0 %v200, 80
    %v557 = vpop.permute.xlu0 %556
    %558 = vrot.lane.b32.xlu0 %v203, 80
    %v559 = vpop.permute.xlu0 %558
    %v562 = vsel %vm243, %v554, 0
    %v565 = vsel %vm243, %v555, 0
    %v567 = vsel %vm273, %v559, 0
    %569 = vmatpush.msra.mxu0 0.0
    %570 = vmatpush.msra.mxu0 0.0
    %571 = vmatpush.msra.mxu0 0.0
    %572 = vmatpush.msra.mxu0 0.0
    %573 = vmatpush.msra.mxu0 0.0
    %574 = vmatpush.msra.mxu0 0.0
    %575 = vmatpush.msra.mxu0 0.0
    %576 = vmatpush.msra.mxu0 0.0
    %577 = vmatpush.msra.mxu0 0.0
    %578 = vmatpush.msra.mxu0 0.0
    %579 = vmatpush.msra.mxu0 0.0
    %580 = vmatpush.msra.mxu0 0.0
    %581 = vmatpush.msra.mxu0 0.0
    %582 = vmatpush.msra.mxu0 0.0
    %583 = vmatpush.msra.mxu0 %v567
    %584 = vmatpush.msra.mxu0 %v557
    %585 = vmatmul.f32.gmra.mxu0 %v562
    %v586 = vpop.f32.mrf.mxu0
    %v587 = vadd.f32 0.0, %v586
    %588 = vmatmul.f32.gmra.mxu0 %v565
    %v589 = vpop.f32.mrf.mxu0
    %v590 = vadd.f32 0.0, %v589
    %591 = vdwg.mxu0
    %594 = vrot.lane.b32.xlu0 %v393, 16
    %v595 = vpop.permute.xlu0 %594
    %596 = vrot.lane.b32.xlu0 %v396, 16
    %v597 = vpop.permute.xlu0 %596
    %602 = vrot.lane.b32.xlu0 %v490, 32
    %v603 = vpop.permute.xlu0 %602
    %604 = vrot.lane.b32.xlu0 %v493, 32
    %v605 = vpop.permute.xlu0 %604
    %610 = vrot.lane.b32.xlu0 %v587, 48
    %v611 = vpop.permute.xlu0 %610
    %612 = vrot.lane.b32.xlu0 %v590, 48
    %v613 = vpop.permute.xlu0 %612
    %v616 = vsel %vm211, %v295, %v595
    %v617 = vsel %vm211, %v298, %v597
    %vm618 = vcmask 261120
    %v619 = vsel %vm618, %v616, %v603
    %v620 = vsel %vm618, %v617, %v605
    %vm621 = vcmask 392192
    %v622 = vsel %vm621, %v619, %v611
    %v623 = vsel %vm621, %v620, %v613
    %v624 = vld [vmem:[#allocation2 + $0x180] sm:$0xff]
    %v625 = vld [vmem:[#allocation2 + $0x190] sm:$0xff]
    %v626 = vld [vmem:[#allocation2 + $0x1a0] sm:$0xff]
    %v627 = vld [vmem:[#allocation2 + $0x1b0] sm:$0xff]
    %v628 = vld [vmem:[#allocation2 + $0x1c0] sm:$0xff]
    %v629 = vld [vmem:[#allocation2 + $0x1d0] sm:$0xff]
    %v630 = vld [vmem:[#allocation2 + $0x1e0] sm:$0xff]
    %v631 = vld [vmem:[#allocation2 + $0x1f0] sm:$0xff]
    %v632 = vld [vmem:[#allocation2 + $0x200] ss:$0 sm:$0xff]
    %v634 = vsel %vm40, %v622, 0
    %v637 = vsel %vm40, %v623, 0
    %639 = vmatpush.msra.mxu0 0.0
    %640 = vmatpush.msra.mxu0 0.0
    %641 = vmatpush.msra.mxu0 0.0
    %642 = vmatpush.msra.mxu0 0.0
    %643 = vmatpush.msra.mxu0 0.0
    %644 = vmatpush.msra.mxu0 0.0
    %645 = vmatpush.msra.mxu0 0.0
    %646 = vmatpush.msra.mxu0 0.0
    %647 = vmatpush.msra.mxu0 %v631
    %648 = vmatpush.msra.mxu0 %v630
    %649 = vmatpush.msra.mxu0 %v629
    %650 = vmatpush.msra.mxu0 %v628
    %651 = vmatpush.msra.mxu0 %v627
    %652 = vmatpush.msra.mxu0 %v626
    %653 = vmatpush.msra.mxu0 %v625
    %654 = vmatpush.msra.mxu0 %v624
    %655 = vmatmul.f32.gmra.mxu0 %v634
    %v656 = vpop.f32.mrf.mxu0
    %v657 = vadd.f32 %v632, %v656
    %658 = vmatmul.f32.gmra.mxu0 %v637
    %v659 = vpop.f32.mrf.mxu0
    %v660 = vadd.f32 %v632, %v659
    %661 = vdwg.mxu0
    %v662 = vadd.f32 %v65, %v657
    %v663 = vadd.f32 %v68, %v660
    %v664 = vld [vmem:[#allocation2 + $0x210] ss:$0 sm:$0xff]
    %v665 = vld [vmem:[#allocation2 + $0x220] ss:$0 sm:$0xff]
    %v666 = vsel %vm40, %v662, 0.0
    %667 = vadd.xlane.f32.xlu0 %v666
    %v668 = vpop.xlane.xlu0 %667
    %v669 = vsel %vm77, %v663, 0.0
    %670 = vadd.xlane.f32.xlu0 %v669
    %v671 = vpop.xlane.xlu0 %670
    %v672 = vmul.f32 %v668, %v87
    %v673 = vmul.f32 %v671, %v87
    %v674 = vsub.f32 %v662, %v672
    %v675 = vsub.f32 %v663, %v673
    %v676 = vmul.f32 %v674, %v674
    %v677 = vmul.f32 %v675, %v675
    %v678 = vsel %vm40, %v676, 0.0
    %679 = vadd.xlane.f32.xlu0 %v678
    %v680 = vpop.xlane.xlu0 %679
    %v681 = vsel %vm77, %v677, 0.0
    %682 = vadd.xlane.f32.xlu0 %v681
    %v683 = vpop.xlane.xlu0 %682
    %v684 = vmul.f32 %v680, %v87
    %v685 = vmul.f32 %v683, %v87
    %v686 = vadd.f32 %v684, 1e-05
    %v687 = vadd.f32 %v685, 1e-05
    %v688 = vrsqrt.pop %v686
    %v689 = vmul.f32 %v688, %v686
    %v690 = vmul.f32 %v689, %v688
    %v691 = vmul.f32 0.5, %v690
    %v692 = vsub.f32 1.5, %v691
    %v693 = vmul.f32 %v688, %v692
    %vm694 = vweird.f32 %v686
    %vm695 = vweird.f32 %v688
    %vm696 = vmor %vm694, %vm695
    %v697 = vsel %vm696, %v688, %v693
    %v698 = vrsqrt.pop %v687
    %v699 = vmul.f32 %v698, %v687
    %v700 = vmul.f32 %v699, %v698
    %v701 = vmul.f32 0.5, %v700
    %v702 = vsub.f32 1.5, %v701
    %v703 = vmul.f32 %v698, %v702
    %vm704 = vweird.f32 %v687
    %vm705 = vweird.f32 %v698
    %vm706 = vmor %vm704, %vm705
    %v707 = vsel %vm706, %v698, %v703
    %v708 = vmul.f32 %v674, %v697
    %v709 = vmul.f32 %v675, %v707
    %v710 = vmul.f32 %v708, %v664
    %v711 = vmul.f32 %v709, %v664
    %v712 = vadd.f32 %v710, %v665
    %v713 = vadd.f32 %v711, %v665
    %v714 = vld [vmem:[#allocation2 + $0x230] sm:$0xff]
    %v715 = vld [vmem:[#allocation2 + $0x238] sm:$0xff]
    %v716 = vld [vmem:[#allocation2 + $0x240] sm:$0xff]
    %v717 = vld [vmem:[#allocation2 + $0x248] sm:$0xff]
    %v718 = vld [vmem:[#allocation2 + $0x250] sm:$0xff]
    %v719 = vld [vmem:[#allocation2 + $0x258] sm:$0xff]
    %v720 = vld [vmem:[#allocation2 + $0x260] sm:$0xff]
    %v721 = vld [vmem:[#allocation2 + $0x268] sm:$0xff]
    %v722 = vld [vmem:[#allocation2 + $0x270] sm:$0xff]
    %v723 = vld [vmem:[#allocation2 + $0x278] sm:$0xff]
    %v724 = vld [vmem:[#allocation2 + $0x280] sm:$0xff]
    %v725 = vld [vmem:[#allocation2 + $0x288] sm:$0xff]
    %v726 = vld [vmem:[#allocation2 + $0x290] sm:$0xff]
    %v727 = vld [vmem:[#allocation2 + $0x298] sm:$0xff]
    %v728 = vld [vmem:[#allocation2 + $0x2a0] sm:$0xff]
    %v729 = vld [vmem:[#allocation2 + $0x2a8] sm:$0xff]
    %s730 = scalar_lea.vmem [#allocation2], 688
    %v731 = vld [vmem:[%s730] ss:$8 sm:$0x3]
    %v733 = vperm.slane %v731, 0
    %v734 = vperm.slane %v731, 1
    %v738 = vsel %vm40, %v712, 0
    %v741 = vsel %vm40, %v713, 0
    %743 = vmatpush.msra.mxu0 0.0
    %744 = vmatpush.msra.mxu0 0.0
    %745 = vmatpush.msra.mxu0 0.0
    %746 = vmatpush.msra.mxu0 0.0
    %747 = vmatpush.msra.mxu0 0.0
    %748 = vmatpush.msra.mxu0 0.0
    %749 = vmatpush.msra.mxu0 0.0
    %750 = vmatpush.msra.mxu0 0.0
    %751 = vmatpush.msra.mxu0 %v728
    %752 = vmatpush.msra.mxu0 %v726
    %753 = vmatpush.msra.mxu0 %v724
    %754 = vmatpush.msra.mxu0 %v722
    %755 = vmatpush.msra.mxu0 %v720
    %756 = vmatpush.msra.mxu0 %v718
    %757 = vmatpush.msra.mxu0 %v716
    %758 = vmatpush.msra.mxu0 %v714
    %759 = vmatmul.f32.gmra.mxu0 %v738
    %v760 = vpop.f32.mrf.mxu0
    %v761 = vadd.f32 %v733, %v760
    %762 = vmatmul.f32.gmra.mxu0 %v741
    %v763 = vpop.f32.mrf.mxu0
    %v764 = vadd.f32 %v733, %v763
    %765 = vdwg.mxu0
    %766 = vmatpush.msra.mxu0 0.0
    %767 = vmatpush.msra.mxu0 0.0
    %768 = vmatpush.msra.mxu0 0.0
    %769 = vmatpush.msra.mxu0 0.0
    %770 = vmatpush.msra.mxu0 0.0
    %771 = vmatpush.msra.mxu0 0.0
    %772 = vmatpush.msra.mxu0 0.0
    %773 = vmatpush.msra.mxu0 0.0
    %774 = vmatpush.msra.mxu0 %v729
    %775 = vmatpush.msra.mxu0 %v727
    %776 = vmatpush.msra.mxu0 %v725
    %777 = vmatpush.msra.mxu0 %v723
    %778 = vmatpush.msra.mxu0 %v721
    %779 = vmatpush.msra.mxu0 %v719
    %780 = vmatpush.msra.mxu0 %v717
    %781 = vmatpush.msra.mxu0 %v715
    %782 = vmatmul.f32.gmra.mxu0 %v738
    %v783 = vpop.f32.mrf.mxu0
    %v784 = vadd.f32 %v734, %v783
    %785 = vmatmul.f32.gmra.mxu0 %v741
    %v786 = vpop.f32.mrf.mxu0
    %v787 = vadd.f32 %v734, %v786
    %788 = vdwg.mxu0
    %v789 = vmul.f32 %v761, 0.5
    %v790 = vmul.f32 %v784, 0.5
    %v791 = vmul.f32 %v764, 0.5
    %v792 = vmul.f32 %v787, 0.5
    %v793 = vmul.f32 %v761, 0.044715
    %v794 = vmul.f32 %v784, 0.044715
    %v795 = vmul.f32 %v764, 0.044715
    %v796 = vmul.f32 %v787, 0.044715
    %v797 = vmul.f32 %v793, %v761
    %v798 = vmul.f32 %v794, %v784
    %v799 = vmul.f32 %v795, %v764
    %v800 = vmul.f32 %v796, %v787
    %v801 = vmul.f32 %v797, %v761
    %v802 = vmul.f32 %v798, %v784
    %v803 = vmul.f32 %v799, %v764
    %v804 = vmul.f32 %v800, %v787
    %v805 = vadd.f32 %v761, %v801
    %v806 = vadd.f32 %v784, %v802
    %v807 = vadd.f32 %v764, %v803
    %v808 = vadd.f32 %v787, %v804
    %v809 = vmul.f32 %v805, 0.7978846
    %v810 = vmul.f32 %v806, 0.7978846
    %v811 = vmul.f32 %v807, 0.7978846
    %v812 = vmul.f32 %v808, 0.7978846
    %v813 = vtanh.pop %v809
    %v814 = vtanh.pop %v810
    %v815 = vtanh.pop %v811
    %v816 = vtanh.pop %v812
    %v817 = vadd.f32 %v813, 1.0
    %v818 = vadd.f32 %v814, 1.0
    %v819 = vadd.f32 %v815, 1.0
    %v820 = vadd.f32 %v816, 1.0
    %v821 = vmul.f32 %v789, %v817
    %v822 = vmul.f32 %v790, %v818
    %v823 = vmul.f32 %v791, %v819
    %v824 = vmul.f32 %v792, %v820
    %v825 = vld [vmem:[#allocation2 + $0x2c0] sm:$0xff]
    %v826 = vld [vmem:[#allocation2 + $0x2d0] sm:$0xff]
    %v827 = vld [vmem:[#allocation2 + $0x2e0] sm:$0xff]
    %v828 = vld [vmem:[#allocation2 + $0x2f0] sm:$0xff]
    %v829 = vld [vmem:[#allocation2 + $0x300] sm:$0xff]
    %v830 = vld [vmem:[#allocation2 + $0x310] sm:$0xff]
    %v831 = vld [vmem:[#allocation2 + $0x320] sm:$0xff]
    %v832 = vld [vmem:[#allocation2 + $0x330] sm:$0xff]
    %v833 = vld [vmem:[#allocation2 + $0x340] sm:$0xff]
    %v834 = vld [vmem:[#allocation2 + $0x350] sm:$0xff]
    %v835 = vld [vmem:[#allocation2 + $0x360] sm:$0xff]
    %v836 = vld [vmem:[#allocation2 + $0x370] sm:$0xff]
    %v837 = vld [vmem:[#allocation2 + $0x380] sm:$0xff]
    %v838 = vld [vmem:[#allocation2 + $0x390] sm:$0xff]
    %v839 = vld [vmem:[#allocation2 + $0x3a0] sm:$0xff]
    %v840 = vld [vmem:[#allocation2 + $0x3b0] sm:$0xff]
    %v841 = vld [vmem:[#allocation2 + $0x3c0] sm:$0xff]
    %v842 = vld [vmem:[#allocation2 + $0x3d0] sm:$0xff]
    %v843 = vld [vmem:[#allocation2 + $0x3e0] sm:$0xff]
    %v844 = vld [vmem:[#allocation2 + $0x3f0] sm:$0xff]
    %v845 = vld [vmem:[#allocation2 + $0x400] sm:$0xff]
    %v846 = vld [vmem:[#allocation2 + $0x410] sm:$0xff]
    %v847 = vld [vmem:[#allocation2 + $0x420] sm:$0xff]
    %v848 = vld [vmem:[#allocation2 + $0x430] sm:$0xff]
    %v849 = vld [vmem:[#allocation2 + $0x440] sm:$0xff]
    %v850 = vld [vmem:[#allocation2 + $0x450] sm:$0xff]
    %v851 = vld [vmem:[#allocation2 + $0x460] sm:$0xff]
    %v852 = vld [vmem:[#allocation2 + $0x470] sm:$0xff]
    %v853 = vld [vmem:[#allocation2 + $0x480] sm:$0xff]
    %v854 = vld [vmem:[#allocation2 + $0x490] sm:$0xff]
    %v855 = vld [vmem:[#allocation2 + $0x4a0] sm:$0xff]
    %v856 = vld [vmem:[#allocation2 + $0x4b0] sm:$0xff]
    %v857 = vld [vmem:[#allocation2 + $0x4c0] ss:$0 sm:$0xff]
    %858 = vmatpush.msra.mxu0 %v840
    %859 = vmatpush.msra.mxu0 %v839
    %860 = vmatpush.msra.mxu0 %v838
    %861 = vmatpush.msra.mxu0 %v837
    %862 = vmatpush.msra.mxu0 %v836
    %863 = vmatpush.msra.mxu0 %v835
    %864 = vmatpush.msra.mxu0 %v834
    %865 = vmatpush.msra.mxu0 %v833
    %866 = vmatpush.msra.mxu0 %v832
    %867 = vmatpush.msra.mxu0 %v831
    %868 = vmatpush.msra.mxu0 %v830
    %869 = vmatpush.msra.mxu0 %v829
    %870 = vmatpush.msra.mxu0 %v828
    %871 = vmatpush.msra.mxu0 %v827
    %872 = vmatpush.msra.mxu0 %v826
    %873 = vmatpush.msra.mxu0 %v825
    %874 = vmatmul.f32.gmra.mxu0 %v821
    %v875 = vpop.f32.mrf.mxu0
    %v876 = vadd.f32 %v857, %v875
    %877 = vmatmul.f32.gmra.mxu0 %v823
    %v878 = vpop.f32.mrf.mxu0
    %v879 = vadd.f32 %v857, %v878
    %880 = vdwg.mxu0
    %881 = vmatpush.msra.mxu0 %v856
    %882 = vmatpush.msra.mxu0 %v855
    %883 = vmatpush.msra.mxu0 %v854
    %884 = vmatpush.msra.mxu0 %v853
    %885 = vmatpush.msra.mxu0 %v852
    %886 = vmatpush.msra.mxu0 %v851
    %887 = vmatpush.msra.mxu0 %v850
    %888 = vmatpush.msra.mxu0 %v849
    %889 = vmatpush.msra.mxu0 %v848
    %890 = vmatpush.msra.mxu0 %v847
    %891 = vmatpush.msra.mxu0 %v846
    %892 = vmatpush.msra.mxu0 %v845
    %893 = vmatpush.msra.mxu0 %v844
    %894 = vmatpush.msra.mxu0 %v843
    %895 = vmatpush.msra.mxu0 %v842
    %896 = vmatpush.msra.mxu0 %v841
    %897 = vmatmul.f32.gmra.mxu0 %v822
    %v898 = vpop.f32.mrf.mxu0
    %v899 = vadd.f32 %v876, %v898
    %900 = vmatmul.f32.gmra.mxu0 %v824
    %v901 = vpop.f32.mrf.mxu0
    %v902 = vadd.f32 %v879, %v901
    %903 = vdwg.mxu0
    %v904 = vadd.f32 %v662, %v899
    %v905 = vadd.f32 %v663, %v902
    %v906 = vld [vmem:[#allocation2 + $0x4d0] ss:$0 sm:$0xff]
    %v907 = vld [vmem:[#allocation2 + $0x4e0] ss:$0 sm:$0xff]
    %v908 = vsel %vm40, %v904, 0.0
    %909 = vadd.xlane.f32.xlu0 %v908
    %v910 = vpop.xlane.xlu0 %909
    %v911 = vsel %vm77, %v905, 0.0
    %912 = vadd.xlane.f32.xlu0 %v911
    %v913 = vpop.xlane.xlu0 %912
    %v914 = vmul.f32 %v910, %v87
    %v915 = vmul.f32 %v913, %v87
    %v916 = vsub.f32 %v904, %v914
    %v917 = vsub.f32 %v905, %v915
    %v918 = vmul.f32 %v916, %v916
    %v919 = vmul.f32 %v917, %v917
    %v920 = vsel %vm40, %v918, 0.0
    %921 = vadd.xlane.f32.xlu0 %v920
    %v922 = vpop.xlane.xlu0 %921
    %v923 = vsel %vm77, %v919, 0.0
    %924 = vadd.xlane.f32.xlu0 %v923
    %v925 = vpop.xlane.xlu0 %924
    %v926 = vmul.f32 %v922, %v87
    %v927 = vmul.f32 %v925, %v87
    %v928 = vadd.f32 %v926, 1e-05
    %v929 = vadd.f32 %v927, 1e-05
    %v930 = vrsqrt.pop %v928
    %v931 = vmul.f32 %v930, %v928
    %v932 = vmul.f32 %v931, %v930
    %v933 = vmul.f32 0.5, %v932
    %v934 = vsub.f32 1.5, %v933
    %v935 = vmul.f32 %v930, %v934
    %vm936 = vweird.f32 %v928
    %vm937 = vweird.f32 %v930
    %vm938 = vmor %vm936, %vm937
    %v939 = vsel %vm938, %v930, %v935
    %v940 = vrsqrt.pop %v929
    %v941 = vmul.f32 %v940, %v929
    %v942 = vmul.f32 %v941, %v940
    %v943 = vmul.f32 0.5, %v942
    %v944 = vsub.f32 1.5, %v943
    %v945 = vmul.f32 %v940, %v944
    %vm946 = vweird.f32 %v929
    %vm947 = vweird.f32 %v940
    %vm948 = vmor %vm946, %vm947
    %v949 = vsel %vm948, %v940, %v945
    %v950 = vmul.f32 %v916, %v939
    %v951 = vmul.f32 %v917, %v949
    %v952 = vmul.f32 %v950, %v906
    %v953 = vmul.f32 %v951, %v906
    %v954 = vadd.f32 %v952, %v907
    %v955 = vadd.f32 %v953, %v907
    %v956 = vld [vmem:[#allocation2 + $0x4f0] sm:$0xff]
    %v957 = vld [vmem:[#allocation2 + $0x4f8] sm:$0xff]
    %v958 = vld [vmem:[#allocation2 + $0x500] sm:$0xff]
    %v959 = vld [vmem:[#allocation2 + $0x508] sm:$0xff]
    %v960 = vld [vmem:[#allocation2 + $0x510] sm:$0xff]
    %v961 = vld [vmem:[#allocation2 + $0x518] sm:$0xff]
    %v962 = vld [vmem:[#allocation2 + $0x520] sm:$0xff]
    %v963 = vld [vmem:[#allocation2 + $0x528] sm:$0xff]
    %v964 = vld [vmem:[#allocation2 + $0x530] sm:$0xff]
    %v965 = vld [vmem:[#allocation2 + $0x538] sm:$0xff]
    %v966 = vld [vmem:[#allocation2 + $0x540] sm:$0xff]
    %v967 = vld [vmem:[#allocation2 + $0x548] sm:$0xff]
    %v968 = vld [vmem:[#allocation2 + $0x550] sm:$0xff]
    %v969 = vld [vmem:[#allocation2 + $0x558] sm:$0xff]
    %v970 = vld [vmem:[#allocation2 + $0x560] sm:$0xff]
    %v971 = vld [vmem:[#allocation2 + $0x568] sm:$0xff]
    %s972 = scalar_lea.vmem [#allocation2], 1392
    %v973 = vld [vmem:[%s972] ss:$8 sm:$0x3]
    %v975 = vperm.slane %v973, 0
    %v976 = vperm.slane %v973, 1
    %v980 = vsel %vm40, %v954, 0
    %v983 = vsel %vm40, %v955, 0
    %985 = vmatpush.msra.mxu0 0.0
    %986 = vmatpush.msra.mxu0 0.0
    %987 = vmatpush.msra.mxu0 0.0
    %988 = vmatpush.msra.mxu0 0.0
    %989 = vmatpush.msra.mxu0 0.0
    %990 = vmatpush.msra.mxu0 0.0
    %991 = vmatpush.msra.mxu0 0.0
    %992 = vmatpush.msra.mxu0 0.0
    %993 = vmatpush.msra.mxu0 %v970
    %994 = vmatpush.msra.mxu0 %v968
    %995 = vmatpush.msra.mxu0 %v966
    %996 = vmatpush.msra.mxu0 %v964
    %997 = vmatpush.msra.mxu0 %v962
    %998 = vmatpush.msra.mxu0 %v960
    %999 = vmatpush.msra.mxu0 %v958
    %1000 = vmatpush.msra.mxu0 %v956
    %1001 = vmatmul.f32.gmra.mxu0 %v980
    %v1002 = vpop.f32.mrf.mxu0
    %v1003 = vadd.f32 %v975, %v1002
    %1004 = vmatmul.f32.gmra.mxu0 %v983
    %v1005 = vpop.f32.mrf.mxu0
    %v1006 = vadd.f32 %v975, %v1005
    %1007 = vdwg.mxu0
    %1008 = vmatpush.msra.mxu0 0.0
    %1009 = vmatpush.msra.mxu0 0.0
    %1010 = vmatpush.msra.mxu0 0.0
    %1011 = vmatpush.msra.mxu0 0.0
    %1012 = vmatpush.msra.mxu0 0.0
    %1013 = vmatpush.msra.mxu0 0.0
    %1014 = vmatpush.msra.mxu0 0.0
    %1015 = vmatpush.msra.mxu0 0.0
    %1016 = vmatpush.msra.mxu0 %v971
    %1017 = vmatpush.msra.mxu0 %v969
    %1018 = vmatpush.msra.mxu0 %v967
    %1019 = vmatpush.msra.mxu0 %v965
    %1020 = vmatpush.msra.mxu0 %v963
    %1021 = vmatpush.msra.mxu0 %v961
    %1022 = vmatpush.msra.mxu0 %v959
    %1023 = vmatpush.msra.mxu0 %v957
    %1024 = vmatmul.f32.gmra.mxu0 %v980
    %v1025 = vpop.f32.mrf.mxu0
    %v1026 = vadd.f32 %v976, %v1025
    %1027 = vmatmul.f32.gmra.mxu0 %v983
    %v1028 = vpop.f32.mrf.mxu0
    %v1029 = vadd.f32 %v976, %v1028
    %1030 = vdwg.mxu0
    %1033 = vrot.lane.b32.xlu0 %v1003, 64
    %v1034 = vpop.permute.xlu0 %1033
    %1035 = vrot.lane.b32.xlu0 %v1006, 64
    %v1036 = vpop.permute.xlu0 %1035
    %v1037 = vsel %vm211, %v1003, 0
    %v1039 = vsel %vm211, %v1006, 0
    %v1041 = vsel %vm211, %v1034, 0
    %v1043 = vsel %vm211, %v1036, 0
    %1045 = vmatpush.xpose.msra.mxu0 0.0
    %1046 = vmatpush.xpose.msra.mxu0 0.0
    %1047 = vmatpush.xpose.msra.mxu0 0.0
    %1048 = vmatpush.xpose.msra.mxu0 0.0
    %1049 = vmatpush.xpose.msra.mxu0 0.0
    %1050 = vmatpush.xpose.msra.mxu0 0.0
    %1051 = vmatpush.xpose.msra.mxu0 0.0
    %1052 = vmatpush.xpose.msra.mxu0 0.0
    %1053 = vmatpush.xpose.msra.mxu0 0.0
    %1054 = vmatpush.xpose.msra.mxu0 0.0
    %1055 = vmatpush.xpose.msra.mxu0 0.0
    %1056 = vmatpush.xpose.msra.mxu0 0.0
    %1057 = vmatpush.xpose.msra.mxu0 0.0
    %1058 = vmatpush.xpose.msra.mxu0 0.0
    %1059 = vmatpush.xpose.msra.mxu0 %v1043
    %1060 = vmatpush.xpose.msra.mxu0 %v1041
    %1061 = vmatmul.f32.gmra.mxu0 %v1037
    %v1062 = vpop.f32.mrf.mxu0
    %v1063 = vadd.f32 %v70, %v1062
    %1064 = vmatmul.f32.gmra.mxu0 %v1039
    %v1065 = vpop.f32.mrf.mxu0
    %v1066 = vadd.f32 %v71, %v1065
    %1067 = vdwg.mxu0
    %v1068 = vsel %vm243, %v1063, -inf
    %1069 = vmax.xlane.f32.xlu0 %v1068
    %v1070 = vpop.xlane.xlu0 %1069
    %v1071 = vsel %vm247, %v1066, -inf
    %1072 = vmax.xlane.f32.xlu0 %v1071
    %v1073 = vpop.xlane.xlu0 %1072
    %v1074 = vsub.f32 %v1063, %v1070
    %v1075 = vsub.f32 %v1066, %v1073
    %v1076 = vmul.f32 %v1074, 1.442695
    %v1077 = vpow.pop %v1076
    %v1078 = vmul.f32 %v1075, 1.442695
    %v1079 = vpow.pop %v1078
    %v1080 = vsel %vm243, %v1077, 0.0
    %1081 = vadd.xlane.f32.xlu0 %v1080
    %v1082 = vpop.xlane.xlu0 %1081
    %v1083 = vsel %vm247, %v1079, 0.0
    %1084 = vadd.xlane.f32.xlu0 %v1083
    %v1085 = vpop.xlane.xlu0 %1084
    %v1086 = vrcp.pop %v1082
    %v1087 = vrcp.pop %v1085
    %v1088 = vmul.f32 %v1077, %v1086
    %v1089 = vmul.f32 %v1079, %v1087
    %v1091 = vsel %vm243, %v1088, 0
    %v1094 = vsel %vm243, %v1089, 0
    %v1097 = vsel %vm273, %v1029, 0
    %1099 = vmatpush.msra.mxu0 0.0
    %1100 = vmatpush.msra.mxu0 0.0
    %1101 = vmatpush.msra.mxu0 0.0
    %1102 = vmatpush.msra.mxu0 0.0
    %1103 = vmatpush.msra.mxu0 0.0
    %1104 = vmatpush.msra.mxu0 0.0
    %1105 = vmatpush.msra.mxu0 0.0
    %1106 = vmatpush.msra.mxu0 0.0
    %1107 = vmatpush.msra.mxu0 0.0
    %1108 = vmatpush.msra.mxu0 0.0
    %1109 = vmatpush.msra.mxu0 0.0
    %1110 = vmatpush.msra.mxu0 0.0
    %1111 = vmatpush.msra.mxu0 0.0
    %1112 = vmatpush.msra.mxu0 0.0
    %1113 = vmatpush.msra.mxu0 %v1097
    %1114 = vmatpush.msra.mxu0 %v1026
    %1115 = vmatmul.f32.gmra.mxu0 %v1091
    %v1116 = vpop.f32.mrf.mxu0
    %v1117 = vadd.f32 0.0, %v1116
    %1118 = vmatmul.f32.gmra.mxu0 %v1094
    %v1119 = vpop.f32.mrf.mxu0
    %v1120 = vadd.f32 0.0, %v1119
    %1121 = vdwg.mxu0
    %1122 = vrot.lane.b32.xlu0 %v1003, 112
    %v1123 = vpop.permute.xlu0 %1122
    %1124 = vrot.lane.b32.xlu0 %v1006, 112
    %v1125 = vpop.permute.xlu0 %1124
    %1126 = vrot.lane.b32.xlu0 %v1003, 48
    %v1127 = vpop.permute.xlu0 %1126
    %1128 = vrot.lane.b32.xlu0 %v1006, 48
    %v1129 = vpop.permute.xlu0 %1128
    %v1130 = vsel %vm211, %v1123, 0
    %v1132 = vsel %vm211, %v1125, 0
    %v1134 = vsel %vm211, %v1127, 0
    %v1136 = vsel %vm211, %v1129, 0
    %1138 = vmatpush.xpose.msra.mxu0 0.0
    %1139 = vmatpush.xpose.msra.mxu0 0.0
    %1140 = vmatpush.xpose.msra.mxu0 0.0
    %1141 = vmatpush.xpose.msra.mxu0 0.0
    %1142 = vmatpush.xpose.msra.mxu0 0.0
    %1143 = vmatpush.xpose.msra.mxu0 0.0
    %1144 = vmatpush.xpose.msra.mxu0 0.0
    %1145 = vmatpush.xpose.msra.mxu0 0.0
    %1146 = vmatpush.xpose.msra.mxu0 0.0
    %1147 = vmatpush.xpose.msra.mxu0 0.0
    %1148 = vmatpush.xpose.msra.mxu0 0.0
    %1149 = vmatpush.xpose.msra.mxu0 0.0
    %1150 = vmatpush.xpose.msra.mxu0 0.0
    %1151 = vmatpush.xpose.msra.mxu0 0.0
    %1152 = vmatpush.xpose.msra.mxu0 %v1136
    %1153 = vmatpush.xpose.msra.mxu0 %v1134
    %1154 = vmatmul.f32.gmra.mxu0 %v1130
    %v1155 = vpop.f32.mrf.mxu0
    %v1156 = vadd.f32 %v70, %v1155
    %1157 = vmatmul.f32.gmra.mxu0 %v1132
    %v1158 = vpop.f32.mrf.mxu0
    %v1159 = vadd.f32 %v71, %v1158
    %1160 = vdwg.mxu0
    %v1161 = vsel %vm243, %v1156, -inf
    %1162 = vmax.xlane.f32.xlu0 %v1161
    %v1163 = vpop.xlane.xlu0 %1162
    %v1164 = vsel %vm247, %v1159, -inf
    %1165 = vmax.xlane.f32.xlu0 %v1164
    %v1166 = vpop.xlane.xlu0 %1165
    %v1167 = vsub.f32 %v1156, %v1163
    %v1168 = vsub.f32 %v1159, %v1166
    %v1169 = vmul.f32 %v1167, 1.442695
    %v1170 = vpow.pop %v1169
    %v1171 = vmul.f32 %v1168, 1.442695
    %v1172 = vpow.pop %v1171
    %v1173 = vsel %vm243, %v1170, 0.0
    %1174 = vadd.xlane.f32.xlu0 %v1173
    %v1175 = vpop.xlane.xlu0 %1174
    %v1176 = vsel %vm247, %v1172, 0.0
    %1177 = vadd.xlane.f32.xlu0 %v1176
    %v1178 = vpop.xlane.xlu0 %1177
    %v1179 = vrcp.pop %v1175
    %v1180 = vrcp.pop %v1178
    %v1181 = vmul.f32 %v1170, %v1179
    %v1182 = vmul.f32 %v1172, %v1180
    %1184 = vrot.lane.b32.xlu0 %v1026, 112
    %v1185 = vpop.permute.xlu0 %1184
    %1186 = vrot.lane.b32.xlu0 %v1029, 112
    %v1187 = vpop.permute.xlu0 %1186
    %v1190 = vsel %vm243, %v1181, 0
    %v1193 = vsel %vm243, %v1182, 0
    %v1195 = vsel %vm273, %v1187, 0
    %1197 = vmatpush.msra.mxu0 0.0
    %1198 = vmatpush.msra.mxu0 0.0
    %1199 = vmatpush.msra.mxu0 0.0
    %1200 = vmatpush.msra.mxu0 0.0
    %1201 = vmatpush.msra.mxu0 0.0
    %1202 = vmatpush.msra.mxu0 0.0
    %1203 = vmatpush.msra.mxu0 0.0
    %1204 = vmatpush.msra.mxu0 0.0
    %1205 = vmatpush.msra.mxu0 0.0
    %1206 = vmatpush.msra.mxu0 0.0
    %1207 = vmatpush.msra.mxu0 0.0
    %1208 = vmatpush.msra.mxu0 0.0
    %1209 = vmatpush.msra.mxu0 0.0
    %1210 = vmatpush.msra.mxu0 0.0
    %1211 = vmatpush.msra.mxu0 %v1195
    %1212 = vmatpush.msra.mxu0 %v1185
    %1213 = vmatmul.f32.gmra.mxu0 %v1190
    %v1214 = vpop.f32.mrf.mxu0
    %v1215 = vadd.f32 0.0, %v1214
    %1216 = vmatmul.f32.gmra.mxu0 %v1193
    %v1217 = vpop.f32.mrf.mxu0
    %v1218 = vadd.f32 0.0, %v1217
    %1219 = vdwg.mxu0
    %1220 = vrot.lane.b32.xlu0 %v1003, 96
    %v1221 = vpop.permute.xlu0 %1220
    %1222 = vrot.lane.b32.xlu0 %v1006, 96
    %v1223 = vpop.permute.xlu0 %1222
    %1224 = vrot.lane.b32.xlu0 %v1003, 32
    %v1225 = vpop.permute.xlu0 %1224
    %1226 = vrot.lane.b32.xlu0 %v1006, 32
    %v1227 = vpop.permute.xlu0 %1226
    %v1228 = vsel %vm211, %v1221, 0
    %v1230 = vsel %vm211, %v1223, 0
    %v1232 = vsel %vm211, %v1225, 0
    %v1234 = vsel %vm211, %v1227, 0
    %1236 = vmatpush.xpose.msra.mxu0 0.0
    %1237 = vmatpush.xpose.msra.mxu0 0.0
    %1238 = vmatpush.xpose.msra.mxu0 0.0
    %1239 = vmatpush.xpose.msra.mxu0 0.0
    %1240 = vmatpush.xpose.msra.mxu0 0.0
    %1241 = vmatpush.xpose.msra.mxu0 0.0
    %1242 = vmatpush.xpose.msra.mxu0 0.0
    %1243 = vmatpush.xpose.msra.mxu0 0.0
    %1244 = vmatpush.xpose.msra.mxu0 0.0
    %1245 = vmatpush.xpose.msra.mxu0 0.0
    %1246 = vmatpush.xpose.msra.mxu0 0.0
    %1247 = vmatpush.xpose.msra.mxu0 0.0
    %1248 = vmatpush.xpose.msra.mxu0 0.0
    %1249 = vmatpush.xpose.msra.mxu0 0.0
    %1250 = vmatpush.xpose.msra.mxu0 %v1234
    %1251 = vmatpush.xpose.msra.mxu0 %v1232
    %1252 = vmatmul.f32.gmra.mxu0 %v1228
    %v1253 = vpop.f32.mrf.mxu0
    %v1254 = vadd.f32 %v70, %v1253
    %1255 = vmatmul.f32.gmra.mxu0 %v1230
    %v1256 = vpop.f32.mrf.mxu0
    %v1257 = vadd.f32 %v71, %v1256
    %1258 = vdwg.mxu0
    %v1259 = vsel %vm243, %v1254, -inf
    %1260 = vmax.xlane.f32.xlu0 %v1259
    %v1261 = vpop.xlane.xlu0 %1260
    %v1262 = vsel %vm247, %v1257, -inf
    %1263 = vmax.xlane.f32.xlu0 %v1262
    %v1264 = vpop.xlane.xlu0 %1263
    %v1265 = vsub.f32 %v1254, %v1261
    %v1266 = vsub.f32 %v1257, %v1264
    %v1267 = vmul.f32 %v1265, 1.442695
    %v1268 = vpow.pop %v1267
    %v1269 = vmul.f32 %v1266, 1.442695
    %v1270 = vpow.pop %v1269
    %v1271 = vsel %vm243, %v1268, 0.0
    %1272 = vadd.xlane.f32.xlu0 %v1271
    %v1273 = vpop.xlane.xlu0 %1272
    %v1274 = vsel %vm247, %v1270, 0.0
    %1275 = vadd.xlane.f32.xlu0 %v1274
    %v1276 = vpop.xlane.xlu0 %1275
    %v1277 = vrcp.pop %v1273
    %v1278 = vrcp.pop %v1276
    %v1279 = vmul.f32 %v1268, %v1277
    %v1280 = vmul.f32 %v1270, %v1278
    %1281 = vrot.lane.b32.xlu0 %v1026, 96
    %v1282 = vpop.permute.xlu0 %1281
    %1283 = vrot.lane.b32.xlu0 %v1029, 96
    %v1284 = vpop.permute.xlu0 %1283
    %v1287 = vsel %vm243, %v1279, 0
    %v1290 = vsel %vm243, %v1280, 0
    %v1292 = vsel %vm273, %v1284, 0
    %1294 = vmatpush.msra.mxu0 0.0
    %1295 = vmatpush.msra.mxu0 0.0
    %1296 = vmatpush.msra.mxu0 0.0
    %1297 = vmatpush.msra.mxu0 0.0
    %1298 = vmatpush.msra.mxu0 0.0
    %1299 = vmatpush.msra.mxu0 0.0
    %1300 = vmatpush.msra.mxu0 0.0
    %1301 = vmatpush.msra.mxu0 0.0
    %1302 = vmatpush.msra.mxu0 0.0
    %1303 = vmatpush.msra.mxu0 0.0
    %1304 = vmatpush.msra.mxu0 0.0
    %1305 = vmatpush.msra.mxu0 0.0
    %1306 = vmatpush.msra.mxu0 0.0
    %1307 = vmatpush.msra.mxu0 0.0
    %1308 = vmatpush.msra.mxu0 %v1292
    %1309 = vmatpush.msra.mxu0 %v1282
    %1310 = vmatmul.f32.gmra.mxu0 %v1287
    %v1311 = vpop.f32.mrf.mxu0
    %v1312 = vadd.f32 0.0, %v1311
    %1313 = vmatmul.f32.gmra.mxu0 %v1290
    %v1314 = vpop.f32.mrf.mxu0
    %v1315 = vadd.f32 0.0, %v1314
    %1316 = vdwg.mxu0
    %1317 = vrot.lane.b32.xlu0 %v1003, 80
    %v1318 = vpop.permute.xlu0 %1317
    %1319 = vrot.lane.b32.xlu0 %v1006, 80
    %v1320 = vpop.permute.xlu0 %1319
    %1321 = vrot.lane.b32.xlu0 %v1003, 16
    %v1322 = vpop.permute.xlu0 %1321
    %1323 = vrot.lane.b32.xlu0 %v1006, 16
    %v1324 = vpop.permute.xlu0 %1323
    %v1325 = vsel %vm211, %v1318, 0
    %v1327 = vsel %vm211, %v1320, 0
    %v1329 = vsel %vm211, %v1322, 0
    %v1331 = vsel %vm211, %v1324, 0
    %1333 = vmatpush.xpose.msra.mxu0 0.0
    %1334 = vmatpush.xpose.msra.mxu0 0.0
    %1335 = vmatpush.xpose.msra.mxu0 0.0
    %1336 = vmatpush.xpose.msra.mxu0 0.0
    %1337 = vmatpush.xpose.msra.mxu0 0.0
    %1338 = vmatpush.xpose.msra.mxu0 0.0
    %1339 = vmatpush.xpose.msra.mxu0 0.0
    %1340 = vmatpush.xpose.msra.mxu0 0.0
    %1341 = vmatpush.xpose.msra.mxu0 0.0
    %1342 = vmatpush.xpose.msra.mxu0 0.0
    %1343 = vmatpush.xpose.msra.mxu0 0.0
    %1344 = vmatpush.xpose.msra.mxu0 0.0
    %1345 = vmatpush.xpose.msra.mxu0 0.0
    %1346 = vmatpush.xpose.msra.mxu0 0.0
    %1347 = vmatpush.xpose.msra.mxu0 %v1331
    %1348 = vmatpush.xpose.msra.mxu0 %v1329
    %1349 = vmatmul.f32.gmra.mxu0 %v1325
    %v1350 = vpop.f32.mrf.mxu0
    %v1351 = vadd.f32 %v70, %v1350
    %1352 = vmatmul.f32.gmra.mxu0 %v1327
    %v1353 = vpop.f32.mrf.mxu0
    %v1354 = vadd.f32 %v71, %v1353
    %1355 = vdwg.mxu0
    %v1356 = vsel %vm243, %v1351, -inf
    %1357 = vmax.xlane.f32.xlu0 %v1356
    %v1358 = vpop.xlane.xlu0 %1357
    %v1359 = vsel %vm247, %v1354, -inf
    %1360 = vmax.xlane.f32.xlu0 %v1359
    %v1361 = vpop.xlane.xlu0 %1360
    %v1362 = vsub.f32 %v1351, %v1358
    %v1363 = vsub.f32 %v1354, %v1361
    %v1364 = vmul.f32 %v1362, 1.442695
    %v1365 = vpow.pop %v1364
    %v1366 = vmul.f32 %v1363, 1.442695
    %v1367 = vpow.pop %v1366
    %v1368 = vsel %vm243, %v1365, 0.0
    %1369 = vadd.xlane.f32.xlu0 %v1368
    %v1370 = vpop.xlane.xlu0 %1369
    %v1371 = vsel %vm247, %v1367, 0.0
    %1372 = vadd.xlane.f32.xlu0 %v1371
    %v1373 = vpop.xlane.xlu0 %1372
    %v1374 = vrcp.pop %v1370
    %v1375 = vrcp.pop %v1373
    %v1376 = vmul.f32 %v1365, %v1374
    %v1377 = vmul.f32 %v1367, %v1375
    %1378 = vrot.lane.b32.xlu0 %v1026, 80
    %v1379 = vpop.permute.xlu0 %1378
    %1380 = vrot.lane.b32.xlu0 %v1029, 80
    %v1381 = vpop.permute.xlu0 %1380
    %v1384 = vsel %vm243, %v1376, 0
    %v1387 = vsel %vm243, %v1377, 0
    %v1389 = vsel %vm273, %v1381, 0
    %1391 = vmatpush.msra.mxu0 0.0
    %1392 = vmatpush.msra.mxu0 0.0
    %1393 = vmatpush.msra.mxu0 0.0
    %1394 = vmatpush.msra.mxu0 0.0
    %1395 = vmatpush.msra.mxu0 0.0
    %1396 = vmatpush.msra.mxu0 0.0
    %1397 = vmatpush.msra.mxu0 0.0
    %1398 = vmatpush.msra.mxu0 0.0
    %1399 = vmatpush.msra.mxu0 0.0
    %1400 = vmatpush.msra.mxu0 0.0
    %1401 = vmatpush.msra.mxu0 0.0
    %1402 = vmatpush.msra.mxu0 0.0
    %1403 = vmatpush.msra.mxu0 0.0
    %1404 = vmatpush.msra.mxu0 0.0
    %1405 = vmatpush.msra.mxu0 %v1389
    %1406 = vmatpush.msra.mxu0 %v1379
    %1407 = vmatmul.f32.gmra.mxu0 %v1384
    %v1408 = vpop.f32.mrf.mxu0
    %v1409 = vadd.f32 0.0, %v1408
    %1410 = vmatmul.f32.gmra.mxu0 %v1387
    %v1411 = vpop.f32.mrf.mxu0
    %v1412 = vadd.f32 0.0, %v1411
    %1413 = vdwg.mxu0
    %1416 = vrot.lane.b32.xlu0 %v1215, 16
    %v1417 = vpop.permute.xlu0 %1416
    %1418 = vrot.lane.b32.xlu0 %v1218, 16
    %v1419 = vpop.permute.xlu0 %1418
    %1424 = vrot.lane.b32.xlu0 %v1312, 32
    %v1425 = vpop.permute.xlu0 %1424
    %1426 = vrot.lane.b32.xlu0 %v1315, 32
    %v1427 = vpop.permute.xlu0 %1426
    %1432 = vrot.lane.b32.xlu0 %v1409, 48
    %v1433 = vpop.permute.xlu0 %1432
    %1434 = vrot.lane.b32.xlu0 %v1412, 48
    %v1435 = vpop.permute.xlu0 %1434
    %v1438 = vsel %vm211, %v1117, %v1417
    %v1439 = vsel %vm211, %v1120, %v1419
    %v1440 = vsel %vm618, %v1438, %v1425
    %v1441 = vsel %vm618, %v1439, %v1427
    %v1442 = vsel %vm621, %v1440, %v1433
    %v1443 = vsel %vm621, %v1441, %v1435
    %v1444 = vld [vmem:[#allocation2 + $0x580] sm:$0xff]
    %v1445 = vld [vmem:[#allocation2 + $0x590] sm:$0xff]
    %v1446 = vld [vmem:[#allocation2 + $0x5a0] sm:$0xff]
    %v1447 = vld [vmem:[#allocation2 + $0x5b0] sm:$0xff]
    %v1448 = vld [vmem:[#allocation2 + $0x5c0] sm:$0xff]
    %v1449 = vld [vmem:[#allocation2 + $0x5d0] sm:$0xff]
    %v1450 = vld [vmem:[#allocation2 + $0x5e0] sm:$0xff]
    %v1451 = vld [vmem:[#allocation2 + $0x5f0] sm:$0xff]
    %v1452 = vld [vmem:[#allocation2 + $0x600] ss:$0 sm:$0xff]
    %v1454 = vsel %vm40, %v1442, 0
    %v1457 = vsel %vm40, %v1443, 0
    %1459 = vmatpush.msra.mxu0 0.0
    %1460 = vmatpush.msra.mxu0 0.0
    %1461 = vmatpush.msra.mxu0 0.0
    %1462 = vmatpush.msra.mxu0 0.0
    %1463 = vmatpush.msra.mxu0 0.0
    %1464 = vmatpush.msra.mxu0 0.0
    %1465 = vmatpush.msra.mxu0 0.0
    %1466 = vmatpush.msra.mxu0 0.0
    %1467 = vmatpush.msra.mxu0 %v1451
    %1468 = vmatpush.msra.mxu0 %v1450
    %1469 = vmatpush.msra.mxu0 %v1449
    %1470 = vmatpush.msra.mxu0 %v1448
    %1471 = vmatpush.msra.mxu0 %v1447
    %1472 = vmatpush.msra.mxu0 %v1446
    %1473 = vmatpush.msra.mxu0 %v1445
    %1474 = vmatpush.msra.mxu0 %v1444
    %1475 = vmatmul.f32.gmra.mxu0 %v1454
    %v1476 = vpop.f32.mrf.mxu0
    %v1477 = vadd.f32 %v1452, %v1476
    %1478 = vmatmul.f32.gmra.mxu0 %v1457
    %v1479 = vpop.f32.mrf.mxu0
    %v1480 = vadd.f32 %v1452, %v1479
    %1481 = vdwg.mxu0
    %v1482 = vadd.f32 %v904, %v1477
    %v1483 = vadd.f32 %v905, %v1480
    %v1484 = vld [vmem:[#allocation2 + $0x610] ss:$0 sm:$0xff]
    %v1485 = vld [vmem:[#allocation2 + $0x620] ss:$0 sm:$0xff]
    %v1486 = vsel %vm40, %v1482, 0.0
    %1487 = vadd.xlane.f32.xlu0 %v1486
    %v1488 = vpop.xlane.xlu0 %1487
    %v1489 = vsel %vm77, %v1483, 0.0
    %1490 = vadd.xlane.f32.xlu0 %v1489
    %v1491 = vpop.xlane.xlu0 %1490
    %v1492 = vmul.f32 %v1488, %v87
    %v1493 = vmul.f32 %v1491, %v87
    %v1494 = vsub.f32 %v1482, %v1492
    %v1495 = vsub.f32 %v1483, %v1493
    %v1496 = vmul.f32 %v1494, %v1494
    %v1497 = vmul.f32 %v1495, %v1495
    %v1498 = vsel %vm40, %v1496, 0.0
    %1499 = vadd.xlane.f32.xlu0 %v1498
    %v1500 = vpop.xlane.xlu0 %1499
    %v1501 = vsel %vm77, %v1497, 0.0
    %1502 = vadd.xlane.f32.xlu0 %v1501
    %v1503 = vpop.xlane.xlu0 %1502
    %v1504 = vmul.f32 %v1500, %v87
    %v1505 = vmul.f32 %v1503, %v87
    %v1506 = vadd.f32 %v1504, 1e-05
    %v1507 = vadd.f32 %v1505, 1e-05
    %v1508 = vrsqrt.pop %v1506
    %v1509 = vmul.f32 %v1508, %v1506
    %v1510 = vmul.f32 %v1509, %v1508
    %v1511 = vmul.f32 0.5, %v1510
    %v1512 = vsub.f32 1.5, %v1511
    %v1513 = vmul.f32 %v1508, %v1512
    %vm1514 = vweird.f32 %v1506
    %vm1515 = vweird.f32 %v1508
    %vm1516 = vmor %vm1514, %vm1515
    %v1517 = vsel %vm1516, %v1508, %v1513
    %v1518 = vrsqrt.pop %v1507
    %v1519 = vmul.f32 %v1518, %v1507
    %v1520 = vmul.f32 %v1519, %v1518
    %v1521 = vmul.f32 0.5, %v1520
    %v1522 = vsub.f32 1.5, %v1521
    %v1523 = vmul.f32 %v1518, %v1522
    %vm1524 = vweird.f32 %v1507
    %vm1525 = vweird.f32 %v1518
    %vm1526 = vmor %vm1524, %vm1525
    %v1527 = vsel %vm1526, %v1518, %v1523
    %v1528 = vmul.f32 %v1494, %v1517
    %v1529 = vmul.f32 %v1495, %v1527
    %v1530 = vmul.f32 %v1528, %v1484
    %v1531 = vmul.f32 %v1529, %v1484
    %v1532 = vadd.f32 %v1530, %v1485
    %v1533 = vadd.f32 %v1531, %v1485
    %v1534 = vld [vmem:[#allocation2 + $0x630] sm:$0xff]
    %v1535 = vld [vmem:[#allocation2 + $0x638] sm:$0xff]
    %v1536 = vld [vmem:[#allocation2 + $0x640] sm:$0xff]
    %v1537 = vld [vmem:[#allocation2 + $0x648] sm:$0xff]
    %v1538 = vld [vmem:[#allocation2 + $0x650] sm:$0xff]
    %v1539 = vld [vmem:[#allocation2 + $0x658] sm:$0xff]
    %v1540 = vld [vmem:[#allocation2 + $0x660] sm:$0xff]
    %v1541 = vld [vmem:[#allocation2 + $0x668] sm:$0xff]
    %v1542 = vld [vmem:[#allocation2 + $0x670] sm:$0xff]
    %v1543 = vld [vmem:[#allocation2 + $0x678] sm:$0xff]
    %v1544 = vld [vmem:[#allocation2 + $0x680] sm:$0xff]
    %v1545 = vld [vmem:[#allocation2 + $0x688] sm:$0xff]
    %v1546 = vld [vmem:[#allocation2 + $0x690] sm:$0xff]
    %v1547 = vld [vmem:[#allocation2 + $0x698] sm:$0xff]
    %v1548 = vld [vmem:[#allocation2 + $0x6a0] sm:$0xff]
    %v1549 = vld [vmem:[#allocation2 + $0x6a8] sm:$0xff]
    %s1550 = scalar_lea.vmem [#allocation2], 1712
    %v1551 = vld [vmem:[%s1550] ss:$8 sm:$0x3]
    %v1553 = vperm.slane %v1551, 0
    %v1554 = vperm.slane %v1551, 1
    %v1558 = vsel %vm40, %v1532, 0
    %v1561 = vsel %vm40, %v1533, 0
    %1563 = vmatpush.msra.mxu0 0.0
    %1564 = vmatpush.msra.mxu0 0.0
    %1565 = vmatpush.msra.mxu0 0.0
    %1566 = vmatpush.msra.mxu0 0.0
    %1567 = vmatpush.msra.mxu0 0.0
    %1568 = vmatpush.msra.mxu0 0.0
    %1569 = vmatpush.msra.mxu0 0.0
    %1570 = vmatpush.msra.mxu0 0.0
    %1571 = vmatpush.msra.mxu0 %v1548
    %1572 = vmatpush.msra.mxu0 %v1546
    %1573 = vmatpush.msra.mxu0 %v1544
    %1574 = vmatpush.msra.mxu0 %v1542
    %1575 = vmatpush.msra.mxu0 %v1540
    %1576 = vmatpush.msra.mxu0 %v1538
    %1577 = vmatpush.msra.mxu0 %v1536
    %1578 = vmatpush.msra.mxu0 %v1534
    %1579 = vmatmul.f32.gmra.mxu0 %v1558
    %v1580 = vpop.f32.mrf.mxu0
    %v1581 = vadd.f32 %v1553, %v1580
    %1582 = vmatmul.f32.gmra.mxu0 %v1561
    %v1583 = vpop.f32.mrf.mxu0
    %v1584 = vadd.f32 %v1553, %v1583
    %1585 = vdwg.mxu0
    %1586 = vmatpush.msra.mxu0 0.0
    %1587 = vmatpush.msra.mxu0 0.0
    %1588 = vmatpush.msra.mxu0 0.0
    %1589 = vmatpush.msra.mxu0 0.0
    %1590 = vmatpush.msra.mxu0 0.0
    %1591 = vmatpush.msra.mxu0 0.0
    %1592 = vmatpush.msra.mxu0 0.0
    %1593 = vmatpush.msra.mxu0 0.0
    %1594 = vmatpush.msra.mxu0 %v1549
    %1595 = vmatpush.msra.mxu0 %v1547
    %1596 = vmatpush.msra.mxu0 %v1545
    %1597 = vmatpush.msra.mxu0 %v1543
    %1598 = vmatpush.msra.mxu0 %v1541
    %1599 = vmatpush.msra.mxu0 %v1539
    %1600 = vmatpush.msra.mxu0 %v1537
    %1601 = vmatpush.msra.mxu0 %v1535
    %1602 = vmatmul.f32.gmra.mxu0 %v1558
    %v1603 = vpop.f32.mrf.mxu0
    %v1604 = vadd.f32 %v1554, %v1603
    %1605 = vmatmul.f32.gmra.mxu0 %v1561
    %v1606 = vpop.f32.mrf.mxu0
    %v1607 = vadd.f32 %v1554, %v1606
    %1608 = vdwg.mxu0
    %v1609 = vmul.f32 %v1581, 0.5
    %v1610 = vmul.f32 %v1604, 0.5
    %v1611 = vmul.f32 %v1584, 0.5
    %v1612 = vmul.f32 %v1607, 0.5
    %v1613 = vmul.f32 %v1581, 0.044715
    %v1614 = vmul.f32 %v1604, 0.044715
    %v1615 = vmul.f32 %v1584, 0.044715
    %v1616 = vmul.f32 %v1607, 0.044715
    %v1617 = vmul.f32 %v1613, %v1581
    %v1618 = vmul.f32 %v1614, %v1604
    %v1619 = vmul.f32 %v1615, %v1584
    %v1620 = vmul.f32 %v1616, %v1607
    %v1621 = vmul.f32 %v1617, %v1581
    %v1622 = vmul.f32 %v1618, %v1604
    %v1623 = vmul.f32 %v1619, %v1584
    %v1624 = vmul.f32 %v1620, %v1607
    %v1625 = vadd.f32 %v1581, %v1621
    %v1626 = vadd.f32 %v1604, %v1622
    %v1627 = vadd.f32 %v1584, %v1623
    %v1628 = vadd.f32 %v1607, %v1624
    %v1629 = vmul.f32 %v1625, 0.7978846
    %v1630 = vmul.f32 %v1626, 0.7978846
    %v1631 = vmul.f32 %v1627, 0.7978846
    %v1632 = vmul.f32 %v1628, 0.7978846
    %v1633 = vtanh.pop %v1629
    %v1634 = vtanh.pop %v1630
    %v1635 = vtanh.pop %v1631
    %v1636 = vtanh.pop %v1632
    %v1637 = vadd.f32 %v1633, 1.0
    %v1638 = vadd.f32 %v1634, 1.0
    %v1639 = vadd.f32 %v1635, 1.0
    %v1640 = vadd.f32 %v1636, 1.0
    %v1641 = vmul.f32 %v1609, %v1637
    %v1642 = vmul.f32 %v1610, %v1638
    %v1643 = vmul.f32 %v1611, %v1639
    %v1644 = vmul.f32 %v1612, %v1640
    %v1645 = vld [vmem:[#allocation2 + $0x6c0] sm:$0xff]
    %v1646 = vld [vmem:[#allocation2 + $0x6d0] sm:$0xff]
    %v1647 = vld [vmem:[#allocation2 + $0x6e0] sm:$0xff]
    %v1648 = vld [vmem:[#allocation2 + $0x6f0] sm:$0xff]
    %v1649 = vld [vmem:[#allocation2 + $0x700] sm:$0xff]
    %v1650 = vld [vmem:[#allocation2 + $0x710] sm:$0xff]
    %v1651 = vld [vmem:[#allocation2 + $0x720] sm:$0xff]
    %v1652 = vld [vmem:[#allocation2 + $0x730] sm:$0xff]
    %v1653 = vld [vmem:[#allocation2 + $0x740] sm:$0xff]
    %v1654 = vld [vmem:[#allocation2 + $0x750] sm:$0xff]
    %v1655 = vld [vmem:[#allocation2 + $0x760] sm:$0xff]
    %v1656 = vld [vmem:[#allocation2 + $0x770] sm:$0xff]
    %v1657 = vld [vmem:[#allocation2 + $0x780] sm:$0xff]
    %v1658 = vld [vmem:[#allocation2 + $0x790] sm:$0xff]
    %v1659 = vld [vmem:[#allocation2 + $0x7a0] sm:$0xff]
    %v1660 = vld [vmem:[#allocation2 + $0x7b0] sm:$0xff]
    %v1661 = vld [vmem:[#allocation2 + $0x7c0] sm:$0xff]
    %v1662 = vld [vmem:[#allocation2 + $0x7d0] sm:$0xff]
    %v1663 = vld [vmem:[#allocation2 + $0x7e0] sm:$0xff]
    %v1664 = vld [vmem:[#allocation2 + $0x7f0] sm:$0xff]
    %v1665 = vld [vmem:[#allocation2 + $0x800] sm:$0xff]
    %v1666 = vld [vmem:[#allocation2 + $0x810] sm:$0xff]
    %v1667 = vld [vmem:[#allocation2 + $0x820] sm:$0xff]
    %v1668 = vld [vmem:[#allocation2 + $0x830] sm:$0xff]
    %v1669 = vld [vmem:[#allocation2 + $0x840] sm:$0xff]
    %v1670 = vld [vmem:[#allocation2 + $0x850] sm:$0xff]
    %v1671 = vld [vmem:[#allocation2 + $0x860] sm:$0xff]
    %v1672 = vld [vmem:[#allocation2 + $0x870] sm:$0xff]
    %v1673 = vld [vmem:[#allocation2 + $0x880] sm:$0xff]
    %v1674 = vld [vmem:[#allocation2 + $0x890] sm:$0xff]
    %v1675 = vld [vmem:[#allocation2 + $0x8a0] sm:$0xff]
    %v1676 = vld [vmem:[#allocation2 + $0x8b0] sm:$0xff]
    %v1677 = vld [vmem:[#allocation2 + $0x8c0] ss:$0 sm:$0xff]
    %1678 = vmatpush.msra.mxu0 %v1660
    %1679 = vmatpush.msra.mxu0 %v1659
    %1680 = vmatpush.msra.mxu0 %v1658
    %1681 = vmatpush.msra.mxu0 %v1657
    %1682 = vmatpush.msra.mxu0 %v1656
    %1683 = vmatpush.msra.mxu0 %v1655
    %1684 = vmatpush.msra.mxu0 %v1654
    %1685 = vmatpush.msra.mxu0 %v1653
    %1686 = vmatpush.msra.mxu0 %v1652
    %1687 = vmatpush.msra.mxu0 %v1651
    %1688 = vmatpush.msra.mxu0 %v1650
    %1689 = vmatpush.msra.mxu0 %v1649
    %1690 = vmatpush.msra.mxu0 %v1648
    %1691 = vmatpush.msra.mxu0 %v1647
    %1692 = vmatpush.msra.mxu0 %v1646
    %1693 = vmatpush.msra.mxu0 %v1645
    %1694 = vmatmul.f32.gmra.mxu0 %v1641
    %v1695 = vpop.f32.mrf.mxu0
    %v1696 = vadd.f32 %v1677, %v1695
    %1697 = vmatmul.f32.gmra.mxu0 %v1643
    %v1698 = vpop.f32.mrf.mxu0
    %v1699 = vadd.f32 %v1677, %v1698
    %1700 = vdwg.mxu0
    %1701 = vmatpush.msra.mxu0 %v1676
    %1702 = vmatpush.msra.mxu0 %v1675
    %1703 = vmatpush.msra.mxu0 %v1674
    %1704 = vmatpush.msra.mxu0 %v1673
    %1705 = vmatpush.msra.mxu0 %v1672
    %1706 = vmatpush.msra.mxu0 %v1671
    %1707 = vmatpush.msra.mxu0 %v1670
    %1708 = vmatpush.msra.mxu0 %v1669
    %1709 = vmatpush.msra.mxu0 %v1668
    %1710 = vmatpush.msra.mxu0 %v1667
    %1711 = vmatpush.msra.mxu0 %v1666
    %1712 = vmatpush.msra.mxu0 %v1665
    %1713 = vmatpush.msra.mxu0 %v1664
    %1714 = vmatpush.msra.mxu0 %v1663
    %1715 = vmatpush.msra.mxu0 %v1662
    %1716 = vmatpush.msra.mxu0 %v1661
    %1717 = vmatmul.f32.gmra.mxu0 %v1642
    %v1718 = vpop.f32.mrf.mxu0
    %v1719 = vadd.f32 %v1696, %v1718
    %1720 = vmatmul.f32.gmra.mxu0 %v1644
    %v1721 = vpop.f32.mrf.mxu0
    %v1722 = vadd.f32 %v1699, %v1721
    %1723 = vdwg.mxu0
    %v1724 = vadd.f32 %v1482, %v1719
    %v1725 = vadd.f32 %v1483, %v1722
    %v1726 = vld [vmem:[#allocation2 + $0xc0] sm:$0x3]
    %v1728 = vsel %vm243, %v1726, 0
    %v1731 = vsel %vm273, %v1725, 0
    %1733 = vmatpush.msra.mxu0 0.0
    %1734 = vmatpush.msra.mxu0 0.0
    %1735 = vmatpush.msra.mxu0 0.0
    %1736 = vmatpush.msra.mxu0 0.0
    %1737 = vmatpush.msra.mxu0 0.0
    %1738 = vmatpush.msra.mxu0 0.0
    %1739 = vmatpush.msra.mxu0 0.0
    %1740 = vmatpush.msra.mxu0 0.0
    %1741 = vmatpush.msra.mxu0 0.0
    %1742 = vmatpush.msra.mxu0 0.0
    %1743 = vmatpush.msra.mxu0 0.0
    %1744 = vmatpush.msra.mxu0 0.0
    %1745 = vmatpush.msra.mxu0 0.0
    %1746 = vmatpush.msra.mxu0 0.0
    %1747 = vmatpush.msra.mxu0 %v1731
    %1748 = vmatpush.msra.mxu0 %v1724
    %1749 = vmatmul.f32.gmra.mxu0 %v1728
    %v1750 = vpop.f32.mrf.mxu0
    %v1751 = vadd.f32 0.0, %v1750
    %1752 = vdwg.mxu0
    %v1753 = vld [vmem:[#allocation2 + $0x8d0] ss:$0 sm:$0xff]
    %v1754 = vld [vmem:[#allocation2 + $0x8e0] ss:$0 sm:$0xff]
    %v1755 = vsel %vm77, %v1751, 0.0
    %1756 = vadd.xlane.f32.xlu0 %v1755
    %v1757 = vpop.xlane.xlu0 %1756
    %v1758 = vmul.f32 %v1757, %v87
    %v1759 = vsub.f32 %v1751, %v1758
    %v1760 = vmul.f32 %v1759, %v1759
    %v1761 = vsel %vm77, %v1760, 0.0
    %1762 = vadd.xlane.f32.xlu0 %v1761
    %v1763 = vpop.xlane.xlu0 %1762
    %v1764 = vmul.f32 %v1763, %v87
    %v1765 = vadd.f32 %v1764, 1e-05
    %v1766 = vrsqrt.pop %v1765
    %v1767 = vmul.f32 %v1766, %v1765
    %v1768 = vmul.f32 %v1767, %v1766
    %v1769 = vmul.f32 0.5, %v1768
    %v1770 = vsub.f32 1.5, %v1769
    %v1771 = vmul.f32 %v1766, %v1770
    %vm1772 = vweird.f32 %v1765
    %vm1773 = vweird.f32 %v1766
    %vm1774 = vmor %vm1772, %vm1773
    %v1775 = vsel %vm1774, %v1766, %v1771
    %v1776 = vmul.f32 %v1759, %v1775
    %v1777 = vmul.f32 %v1776, %v1753
    %v1778 = vadd.f32 %v1777, %v1754
    %v1779 = vld [vmem:[#allocation2 + $0x8f0] sm:$0xff]
    %v1780 = vld [vmem:[#allocation2 + $0x900] sm:$0xff]
    %v1781 = vld [vmem:[#allocation2 + $0x910] sm:$0xff]
    %v1782 = vld [vmem:[#allocation2 + $0x920] sm:$0xff]
    %v1783 = vld [vmem:[#allocation2 + $0x930] sm:$0xff]
    %v1784 = vld [vmem:[#allocation2 + $0x940] sm:$0xff]
    %v1785 = vld [vmem:[#allocation2 + $0x950] sm:$0xff]
    %v1786 = vld [vmem:[#allocation2 + $0x960] sm:$0xff]
    %v1787 = vld [vmem:[#allocation2 + $0x970] ss:$0 sm:$0xff]
    %v1789 = vsel %vm40, %v1778, 0
    %1791 = vmatpush.msra.mxu0 0.0
    %1792 = vmatpush.msra.mxu0 0.0
    %1793 = vmatpush.msra.mxu0 0.0
    %1794 = vmatpush.msra.mxu0 0.0
    %1795 = vmatpush.msra.mxu0 0.0
    %1796 = vmatpush.msra.mxu0 0.0
    %1797 = vmatpush.msra.mxu0 0.0
    %1798 = vmatpush.msra.mxu0 0.0
    %1799 = vmatpush.msra.mxu0 %v1786
    %1800 = vmatpush.msra.mxu0 %v1785
    %1801 = vmatpush.msra.mxu0 %v1784
    %1802 = vmatpush.msra.mxu0 %v1783
    %1803 = vmatpush.msra.mxu0 %v1782
    %1804 = vmatpush.msra.mxu0 %v1781
    %1805 = vmatpush.msra.mxu0 %v1780
    %1806 = vmatpush.msra.mxu0 %v1779
    %1807 = vmatmul.f32.gmra.mxu0 %v1789
    %v1808 = vpop.f32.mrf.mxu0
    %v1809 = vadd.f32 %v1787, %v1808
    %1810 = vdwg.mxu0
    %v1811 = vmul.f32 %v1809, 0.5
    %v1812 = vmul.f32 %v1809, 0.044715
    %v1813 = vmul.f32 %v1812, %v1809
    %v1814 = vmul.f32 %v1813, %v1809
    %v1815 = vadd.f32 %v1809, %v1814
    %v1816 = vmul.f32 %v1815, 0.7978846
    %v1817 = vtanh.pop %v1816
    %v1818 = vadd.f32 %v1817, 1.0
    %v1819 = vmul.f32 %v1811, %v1818
    %v1820 = vld [vmem:[#allocation2 + $0x980] sm:$0xff]
    %v1821 = vld [vmem:[#allocation2 + $0x990] sm:$0xff]
    %v1822 = vld [vmem:[#allocation2 + $0x9a0] sm:$0xff]
    %v1823 = vld [vmem:[#allocation2 + $0x9b0] sm:$0xff]
    %v1824 = vld [vmem:[#allocation2 + $0x9c0] sm:$0xff]
    %v1825 = vld [vmem:[#allocation2 + $0x9d0] ss:$0 sm:$0xff]
    %vm1826 = vcmask 326656
    %v1828 = vsel %vm1826, %v1819, 0
    %1830 = vmatpush.msra.mxu0 0.0
    %1831 = vmatpush.msra.mxu0 0.0
    %1832 = vmatpush.msra.mxu0 0.0
    %1833 = vmatpush.msra.mxu0 0.0
    %1834 = vmatpush.msra.mxu0 0.0
    %1835 = vmatpush.msra.mxu0 0.0
    %1836 = vmatpush.msra.mxu0 0.0
    %1837 = vmatpush.msra.mxu0 0.0
    %1838 = vmatpush.msra.mxu0 0.0
    %1839 = vmatpush.msra.mxu0 0.0
    %1840 = vmatpush.msra.mxu0 0.0
    %1841 = vmatpush.msra.mxu0 %v1824
    %1842 = vmatpush.msra.mxu0 %v1823
    %1843 = vmatpush.msra.mxu0 %v1822
    %1844 = vmatpush.msra.mxu0 %v1821
    %1845 = vmatpush.msra.mxu0 %v1820
    %1846 = vmatmul.f32.gmra.mxu0 %v1828
    %v1847 = vpop.f32.mrf.mxu0
    %v1848 = vadd.f32 %v1825, %v1847
    %1849 = vdwg.mxu0
    %1850 = vst.msk [vmem:[#allocation5] sm:$0x3] %vm247, %v1848
    // Predicated region
    $region14: #{tpu_custom_call.1} parent=1 // pred_check
      _
    $region15: #{tpu_custom_call.1} parent=1 // pred_check_branch
      %1852 = sbr.rel (0) target = $region17
    $region16: #{tpu_custom_call.1} parent=1 // pred_region
      %1854 = vsyncadd [#allocation4], 0
      %s1856 = sshll.u32 [#allocation5], 4
      %s1857 = int_to_ptr.vmem [resolvable:$true] %s1856
      %s1858 = sshll.u32 %s2, 4
      %s1859 = int_to_ptr.hbm [resolvable:$true] %s1858
      %1861 = dma.vmem_to_hbm [thread:$0]  %s1857, 32, %s1859, [#allocation4]
    $region17: #{tpu_custom_call.1} parent=1 // pred_fallthru
      _
    // Predicated region
    $region18: #{tpu_custom_call.1} parent=1 // pred_check
      _
    $region19: #{tpu_custom_call.1} parent=1 // pred_check_branch
      %1863 = sbr.rel (0) target = $region21
    $region20: #{tpu_custom_call.1} parent=1 // pred_region
      %1865 = dma.done [#allocation4], 32
    $region21: #{tpu_custom_call.1} parent=1 // pred_fallthru
      _
    %1866 = vsyncpa [#allocation3], 1
    %1867 = vsyncpa [#allocation4], 1

</llo_original>
